<compile_context>
chip_gen: v7x
topology: tpu7x:2x2x1
jax: 0.10.0
libtpu: 0.0.40
codegen_flags: <defaults>
</compile_context>

<pallas_src>
import jax
import jax.numpy as jnp
from jax.experimental import pallas as pl
from jax.experimental.pallas import tpu as pltpu


def fusion_attention_kernel(feat_ref, wf_ref, out_ref):
    """feat_ref: (N, TL, D) VMEM; wf_ref: (1, D) VMEM; out_ref: (TL, D) VMEM."""
    n_fuse = feat_ref.shape[0]                     # static; dim0 of the fusion is small
    wf = wf_ref[...].astype(jnp.float32)           # (1, D)

    # Pass 1: per-n score columns, kept in (TL, 1) layout (lane reduce over D).
    scores = []
    for n in range(n_fuse):
        fn = feat_ref[n].astype(jnp.float32)                        # (TL, D)
        scores.append(jnp.sum(fn * wf, axis=-1, keepdims=True))     # (TL, 1)

    # Max-stabilized softmax over n, per l; temporaries stay (TL, 1).
    m = scores[0]
    for n in range(1, n_fuse):
        m = jnp.maximum(m, scores[n])
    exps = [jnp.exp(s - m) for s in scores]                         # (TL, 1) each
    denom = exps[0]
    for n in range(1, n_fuse):
        denom = denom + exps[n]
    inv_denom = 1.0 / denom                        # exact divide (fixes approx-recip mismatch)

    # Pass 2: exp-weighted accumulate; one (TL, D) slab live at a time.
    acc = exps[0] * feat_ref[0].astype(jnp.float32)                 # (TL, D)
    for n in range(1, n_fuse):
        acc = acc + exps[n] * feat_ref[n].astype(jnp.float32)

    out_ref[...] = (acc * inv_denom).astype(out_ref.dtype)


def _vmem_budget():
    """(working-set budget, vmem_limit_bytes) per TensorCore, safe on v5e/v6e/v7x."""
    try:
        vmem_bytes = int(pltpu.get_tpu_info().vmem_capacity_bytes)
    except Exception:
        vmem_bytes = 64 << 20                      # assume smallest (v7x per-core VMEM)
    vmem_bytes = max(vmem_bytes, 32 << 20)
    budget = min((vmem_bytes * 3) // 8, 48 << 20)  # 3/8 of physical, capped at 48 MiB
    limit = min(vmem_bytes // 2, 64 << 20)         # 1/2 of physical, capped at 64 MiB
    return budget, limit


def _pick_block_l(N, L, D, in_itemsize, out_itemsize, budget):
    """Largest sublane-aligned L tile whose pipelined working set fits the budget,
    capped so the L grid has >= 4 steps (v7x megacore sharding + DMA overlap)."""
    per_l = (2 * N * D * in_itemsize   # double-buffered feat tile
             + 2 * D * out_itemsize    # double-buffered out tile
             + 2 * D * 4               # f32 acc + one upcast (TL, D) slab
             + 3 * N * 4)              # per-n (TL, 1) score/exp columns
    tl = int(budget // per_l)
    tl = min(tl, pl.cdiv(L, 4))        # keep >= 4 grid steps when L allows
    tl = max(8, (tl // 8) * 8)         # sublane alignment for (tl, D) blocks
    return L if tl >= L else tl


def fusion_attention(feat, wf, *, block_l=None):
    """feat: (N, L, D); wf: (1, D, 1) (PyTorch parameter shape). Returns (L, D)."""
    N, L, D = feat.shape
    assert wf.shape == (1, D, 1)
    in_itemsize = jnp.dtype(feat.dtype).itemsize
    out_dtype = feat.dtype
    out_itemsize = jnp.dtype(out_dtype).itemsize
    wf_itemsize = jnp.dtype(wf.dtype).itemsize

    budget, vmem_limit = _vmem_budget()
    tl = block_l if block_l is not None else _pick_block_l(
        N, L, D, in_itemsize, out_itemsize, budget)

    wf2d = wf.reshape(1, D)                        # tiny; lane axis = D
    grid = (pl.cdiv(L, tl),)

    cost = pl.CostEstimate(
        flops=4 * N * L * D + 6 * N * L,           # scores + weighted sum + softmax elementwise
        transcendentals=N * L,                     # exp
        bytes_accessed=in_itemsize * N * L * D + out_itemsize * L * D + wf_itemsize * D,
    )

    return pl.pallas_call(
        fusion_attention_kernel,
        out_shape=jax.ShapeDtypeStruct((L, D), out_dtype),
        grid_spec=pltpu.PrefetchScalarGridSpec(
            num_scalar_prefetch=0,
            grid=grid,
            in_specs=[
                pl.BlockSpec((N, tl, D), lambda i: (0, i, 0)),   # native layout, no transpose
                pl.BlockSpec((1, D), lambda i: (0, 0)),
            ],
            out_specs=pl.BlockSpec((tl, D), lambda i: (i, 0)),   # (L, D) written directly
        ),
        compiler_params=pltpu.CompilerParams(
            dimension_semantics=("parallel",),     # independent L tiles -> megacore shards them
            vmem_limit_bytes=int(vmem_limit),
        ),
        cost_estimate=cost,
    )(feat, wf2d)


def fusion_attention_ref(feat, wf):
    """Pure-JAX reference mirroring the PyTorch forward exactly."""
    N, L, D = feat.shape
    f = jnp.transpose(feat, (1, 0, 2))                          # (L, N, D)
    w = jnp.broadcast_to(wf, (L, D, 1))                         # (L, D, 1)
    alpha = jnp.einsum("lnd,ldk->lnk", f, w)                    # (L, N, 1)
    alpha = jax.nn.softmax(alpha, axis=1)
    out = jnp.einsum("lkn,lnd->lkd", jnp.transpose(alpha, (0, 2, 1)), f)  # (L, 1, D)
    return out[:, 0, :]                                         # (L, D)


if __name__ == "__main__":
    key = jax.random.PRNGKey(0)
    k_feat, k_wf = jax.random.split(key)

    N, L, D = 8, 256, 32          # (dim0, seq_len, input_dim); L=256 -> 4-step L grid
    feat = jax.random.normal(k_feat, (N, L, D), dtype=jnp.float32)

    # Deterministic xavier_uniform-style init for wf (1, D, 1): fan_in=D, fan_out=1.
    bound = (6.0 / (D + 1)) ** 0.5
    wf = jax.random.uniform(k_wf, (1, D, 1), dtype=jnp.float32,
                            minval=-bound, maxval=bound)

    out = jax.block_until_ready(fusion_attention(feat, wf))     # auto-tiled, multi-step grid
    ref = fusion_attention_ref(feat, wf)
    assert out.shape == (L, D)
    assert jnp.allclose(out, ref, atol=1e-4, rtol=1e-4), "mismatch vs reference (tiled path)"

    # Small shape -> single-block path (L < tile), different N.
    feat_small = jax.random.normal(jax.random.PRNGKey(1), (4, 8, D), dtype=jnp.float32)
    out_small = jax.block_until_ready(fusion_attention(feat_small, wf))
    ref_small = fusion_attention_ref(feat_small, wf)
    assert jnp.allclose(out_small, ref_small, atol=1e-4, rtol=1e-4), \
        "mismatch vs reference (small path)"

    print("KERNEL_OK")
</pallas_src>

<mosaic_0001>
module attributes {stable_mosaic.version = 11 : i64} {
  func.func @fusion_attention_kernel(%arg0: i32, %arg1: memref<8x64x32xf32, #tpu.memory_space<vmem>>, %arg2: memref<1x32xf32, #tpu.memory_space<vmem>>, %arg3: memref<64x32xf32, #tpu.memory_space<vmem>>) attributes {dimension_semantics = [#tpu.dimension_semantics<parallel>], iteration_bounds = array<i64: 4>, scalar_prefetch = 0 : i64, scratch_operands = 0 : i64, tpu.core_type = #tpu.core_type<tc>, window_params = [{transform_indices = @transform_0, window_bounds = array<i64: 8, 64, 32>}, {pipeline_mode = #tpu.pipeline_mode<synchronous>, transform_indices = @transform_1, window_bounds = array<i64: 1, 32>}, {transform_indices = @transform_2, window_bounds = array<i64: 64, 32>}]} {
    %c0 = arith.constant 0 : index
    %c0_0 = arith.constant 0 : index
    %0 = vector.load %arg2[%c0, %c0_0] : memref<1x32xf32, #tpu.memory_space<vmem>>, vector<1x32xf32>
    %c0_1 = arith.constant 0 : index
    %c0_2 = arith.constant 0 : index
    %c0_3 = arith.constant 0 : index
    %1 = vector.load %arg1[%c0_1, %c0_2, %c0_3] : memref<8x64x32xf32, #tpu.memory_space<vmem>>, vector<1x64x32xf32>
    %2 = vector.shape_cast %1 : vector<1x64x32xf32> to vector<64x32xf32>
    %3 = vector.broadcast %0 : vector<1x32xf32> to vector<64x32xf32>
    %4 = arith.mulf %2, %3 : vector<64x32xf32>
    %cst = arith.constant dense<0.000000e+00> : vector<64xf32>
    %5 = vector.multi_reduction <add>, %4, %cst [1] : vector<64x32xf32> to vector<64xf32>
    %6 = vector.shape_cast %5 : vector<64xf32> to vector<64x1xf32>
    %c1 = arith.constant 1 : index
    %c0_4 = arith.constant 0 : index
    %c0_5 = arith.constant 0 : index
    %7 = vector.load %arg1[%c1, %c0_4, %c0_5] : memref<8x64x32xf32, #tpu.memory_space<vmem>>, vector<1x64x32xf32>
    %8 = vector.shape_cast %7 : vector<1x64x32xf32> to vector<64x32xf32>
    %9 = vector.broadcast %0 : vector<1x32xf32> to vector<64x32xf32>
    %10 = arith.mulf %8, %9 : vector<64x32xf32>
    %cst_6 = arith.constant dense<0.000000e+00> : vector<64xf32>
    %11 = vector.multi_reduction <add>, %10, %cst_6 [1] : vector<64x32xf32> to vector<64xf32>
    %12 = vector.shape_cast %11 : vector<64xf32> to vector<64x1xf32>
    %c2 = arith.constant 2 : index
    %c0_7 = arith.constant 0 : index
    %c0_8 = arith.constant 0 : index
    %13 = vector.load %arg1[%c2, %c0_7, %c0_8] : memref<8x64x32xf32, #tpu.memory_space<vmem>>, vector<1x64x32xf32>
    %14 = vector.shape_cast %13 : vector<1x64x32xf32> to vector<64x32xf32>
    %15 = vector.broadcast %0 : vector<1x32xf32> to vector<64x32xf32>
    %16 = arith.mulf %14, %15 : vector<64x32xf32>
    %cst_9 = arith.constant dense<0.000000e+00> : vector<64xf32>
    %17 = vector.multi_reduction <add>, %16, %cst_9 [1] : vector<64x32xf32> to vector<64xf32>
    %18 = vector.shape_cast %17 : vector<64xf32> to vector<64x1xf32>
    %c3 = arith.constant 3 : index
    %c0_10 = arith.constant 0 : index
    %c0_11 = arith.constant 0 : index
    %19 = vector.load %arg1[%c3, %c0_10, %c0_11] : memref<8x64x32xf32, #tpu.memory_space<vmem>>, vector<1x64x32xf32>
    %20 = vector.shape_cast %19 : vector<1x64x32xf32> to vector<64x32xf32>
    %21 = vector.broadcast %0 : vector<1x32xf32> to vector<64x32xf32>
    %22 = arith.mulf %20, %21 : vector<64x32xf32>
    %cst_12 = arith.constant dense<0.000000e+00> : vector<64xf32>
    %23 = vector.multi_reduction <add>, %22, %cst_12 [1] : vector<64x32xf32> to vector<64xf32>
    %24 = vector.shape_cast %23 : vector<64xf32> to vector<64x1xf32>
    %c4 = arith.constant 4 : index
    %c0_13 = arith.constant 0 : index
    %c0_14 = arith.constant 0 : index
    %25 = vector.load %arg1[%c4, %c0_13, %c0_14] : memref<8x64x32xf32, #tpu.memory_space<vmem>>, vector<1x64x32xf32>
    %26 = vector.shape_cast %25 : vector<1x64x32xf32> to vector<64x32xf32>
    %27 = vector.broadcast %0 : vector<1x32xf32> to vector<64x32xf32>
    %28 = arith.mulf %26, %27 : vector<64x32xf32>
    %cst_15 = arith.constant dense<0.000000e+00> : vector<64xf32>
    %29 = vector.multi_reduction <add>, %28, %cst_15 [1] : vector<64x32xf32> to vector<64xf32>
    %30 = vector.shape_cast %29 : vector<64xf32> to vector<64x1xf32>
    %c5 = arith.constant 5 : index
    %c0_16 = arith.constant 0 : index
    %c0_17 = arith.constant 0 : index
    %31 = vector.load %arg1[%c5, %c0_16, %c0_17] : memref<8x64x32xf32, #tpu.memory_space<vmem>>, vector<1x64x32xf32>
    %32 = vector.shape_cast %31 : vector<1x64x32xf32> to vector<64x32xf32>
    %33 = vector.broadcast %0 : vector<1x32xf32> to vector<64x32xf32>
    %34 = arith.mulf %32, %33 : vector<64x32xf32>
    %cst_18 = arith.constant dense<0.000000e+00> : vector<64xf32>
    %35 = vector.multi_reduction <add>, %34, %cst_18 [1] : vector<64x32xf32> to vector<64xf32>
    %36 = vector.shape_cast %35 : vector<64xf32> to vector<64x1xf32>
    %c6 = arith.constant 6 : index
    %c0_19 = arith.constant 0 : index
    %c0_20 = arith.constant 0 : index
    %37 = vector.load %arg1[%c6, %c0_19, %c0_20] : memref<8x64x32xf32, #tpu.memory_space<vmem>>, vector<1x64x32xf32>
    %38 = vector.shape_cast %37 : vector<1x64x32xf32> to vector<64x32xf32>
    %39 = vector.broadcast %0 : vector<1x32xf32> to vector<64x32xf32>
    %40 = arith.mulf %38, %39 : vector<64x32xf32>
    %cst_21 = arith.constant dense<0.000000e+00> : vector<64xf32>
    %41 = vector.multi_reduction <add>, %40, %cst_21 [1] : vector<64x32xf32> to vector<64xf32>
    %42 = vector.shape_cast %41 : vector<64xf32> to vector<64x1xf32>
    %c7 = arith.constant 7 : index
    %c0_22 = arith.constant 0 : index
    %c0_23 = arith.constant 0 : index
    %43 = vector.load %arg1[%c7, %c0_22, %c0_23] : memref<8x64x32xf32, #tpu.memory_space<vmem>>, vector<1x64x32xf32>
    %44 = vector.shape_cast %43 : vector<1x64x32xf32> to vector<64x32xf32>
    %45 = vector.broadcast %0 : vector<1x32xf32> to vector<64x32xf32>
    %46 = arith.mulf %44, %45 : vector<64x32xf32>
    %cst_24 = arith.constant dense<0.000000e+00> : vector<64xf32>
    %47 = vector.multi_reduction <add>, %46, %cst_24 [1] : vector<64x32xf32> to vector<64xf32>
    %48 = vector.shape_cast %47 : vector<64xf32> to vector<64x1xf32>
    %49 = arith.maximumf %6, %12 : vector<64x1xf32>
    %50 = arith.maximumf %49, %18 : vector<64x1xf32>
    %51 = arith.maximumf %50, %24 : vector<64x1xf32>
    %52 = arith.maximumf %51, %30 : vector<64x1xf32>
    %53 = arith.maximumf %52, %36 : vector<64x1xf32>
    %54 = arith.maximumf %53, %42 : vector<64x1xf32>
    %55 = arith.maximumf %54, %48 : vector<64x1xf32>
    %56 = arith.subf %6, %55 : vector<64x1xf32>
    %57 = math.exp %56 : vector<64x1xf32>
    %58 = arith.subf %12, %55 : vector<64x1xf32>
    %59 = math.exp %58 : vector<64x1xf32>
    %60 = arith.subf %18, %55 : vector<64x1xf32>
    %61 = math.exp %60 : vector<64x1xf32>
    %62 = arith.subf %24, %55 : vector<64x1xf32>
    %63 = math.exp %62 : vector<64x1xf32>
    %64 = arith.subf %30, %55 : vector<64x1xf32>
    %65 = math.exp %64 : vector<64x1xf32>
    %66 = arith.subf %36, %55 : vector<64x1xf32>
    %67 = math.exp %66 : vector<64x1xf32>
    %68 = arith.subf %42, %55 : vector<64x1xf32>
    %69 = math.exp %68 : vector<64x1xf32>
    %70 = arith.subf %48, %55 : vector<64x1xf32>
    %71 = math.exp %70 : vector<64x1xf32>
    %72 = arith.addf %57, %59 : vector<64x1xf32>
    %73 = arith.addf %72, %61 : vector<64x1xf32>
    %74 = arith.addf %73, %63 : vector<64x1xf32>
    %75 = arith.addf %74, %65 : vector<64x1xf32>
    %76 = arith.addf %75, %67 : vector<64x1xf32>
    %77 = arith.addf %76, %69 : vector<64x1xf32>
    %78 = arith.addf %77, %71 : vector<64x1xf32>
    %cst_25 = arith.constant 1.000000e+00 : f32
    %79 = vector.broadcast %cst_25 : f32 to vector<64x1xf32>
    %80 = arith.divf %79, %78 : vector<64x1xf32>
    %c0_26 = arith.constant 0 : index
    %c0_27 = arith.constant 0 : index
    %c0_28 = arith.constant 0 : index
    %81 = vector.load %arg1[%c0_26, %c0_27, %c0_28] : memref<8x64x32xf32, #tpu.memory_space<vmem>>, vector<1x64x32xf32>
    %82 = vector.shape_cast %81 : vector<1x64x32xf32> to vector<64x32xf32>
    %83 = vector.broadcast %57 : vector<64x1xf32> to vector<64x32xf32>
    %84 = arith.mulf %83, %82 : vector<64x32xf32>
    %c1_29 = arith.constant 1 : index
    %c0_30 = arith.constant 0 : index
    %c0_31 = arith.constant 0 : index
    %85 = vector.load %arg1[%c1_29, %c0_30, %c0_31] : memref<8x64x32xf32, #tpu.memory_space<vmem>>, vector<1x64x32xf32>
    %86 = vector.shape_cast %85 : vector<1x64x32xf32> to vector<64x32xf32>
    %87 = vector.broadcast %59 : vector<64x1xf32> to vector<64x32xf32>
    %88 = arith.mulf %87, %86 : vector<64x32xf32>
    %89 = arith.addf %84, %88 : vector<64x32xf32>
    %c2_32 = arith.constant 2 : index
    %c0_33 = arith.constant 0 : index
    %c0_34 = arith.constant 0 : index
    %90 = vector.load %arg1[%c2_32, %c0_33, %c0_34] : memref<8x64x32xf32, #tpu.memory_space<vmem>>, vector<1x64x32xf32>
    %91 = vector.shape_cast %90 : vector<1x64x32xf32> to vector<64x32xf32>
    %92 = vector.broadcast %61 : vector<64x1xf32> to vector<64x32xf32>
    %93 = arith.mulf %92, %91 : vector<64x32xf32>
    %94 = arith.addf %89, %93 : vector<64x32xf32>
    %c3_35 = arith.constant 3 : index
    %c0_36 = arith.constant 0 : index
    %c0_37 = arith.constant 0 : index
    %95 = vector.load %arg1[%c3_35, %c0_36, %c0_37] : memref<8x64x32xf32, #tpu.memory_space<vmem>>, vector<1x64x32xf32>
    %96 = vector.shape_cast %95 : vector<1x64x32xf32> to vector<64x32xf32>
    %97 = vector.broadcast %63 : vector<64x1xf32> to vector<64x32xf32>
    %98 = arith.mulf %97, %96 : vector<64x32xf32>
    %99 = arith.addf %94, %98 : vector<64x32xf32>
    %c4_38 = arith.constant 4 : index
    %c0_39 = arith.constant 0 : index
    %c0_40 = arith.constant 0 : index
    %100 = vector.load %arg1[%c4_38, %c0_39, %c0_40] : memref<8x64x32xf32, #tpu.memory_space<vmem>>, vector<1x64x32xf32>
    %101 = vector.shape_cast %100 : vector<1x64x32xf32> to vector<64x32xf32>
    %102 = vector.broadcast %65 : vector<64x1xf32> to vector<64x32xf32>
    %103 = arith.mulf %102, %101 : vector<64x32xf32>
    %104 = arith.addf %99, %103 : vector<64x32xf32>
    %c5_41 = arith.constant 5 : index
    %c0_42 = arith.constant 0 : index
    %c0_43 = arith.constant 0 : index
    %105 = vector.load %arg1[%c5_41, %c0_42, %c0_43] : memref<8x64x32xf32, #tpu.memory_space<vmem>>, vector<1x64x32xf32>
    %106 = vector.shape_cast %105 : vector<1x64x32xf32> to vector<64x32xf32>
    %107 = vector.broadcast %67 : vector<64x1xf32> to vector<64x32xf32>
    %108 = arith.mulf %107, %106 : vector<64x32xf32>
    %109 = arith.addf %104, %108 : vector<64x32xf32>
    %c6_44 = arith.constant 6 : index
    %c0_45 = arith.constant 0 : index
    %c0_46 = arith.constant 0 : index
    %110 = vector.load %arg1[%c6_44, %c0_45, %c0_46] : memref<8x64x32xf32, #tpu.memory_space<vmem>>, vector<1x64x32xf32>
    %111 = vector.shape_cast %110 : vector<1x64x32xf32> to vector<64x32xf32>
    %112 = vector.broadcast %69 : vector<64x1xf32> to vector<64x32xf32>
    %113 = arith.mulf %112, %111 : vector<64x32xf32>
    %114 = arith.addf %109, %113 : vector<64x32xf32>
    %c7_47 = arith.constant 7 : index
    %c0_48 = arith.constant 0 : index
    %c0_49 = arith.constant 0 : index
    %115 = vector.load %arg1[%c7_47, %c0_48, %c0_49] : memref<8x64x32xf32, #tpu.memory_space<vmem>>, vector<1x64x32xf32>
    %116 = vector.shape_cast %115 : vector<1x64x32xf32> to vector<64x32xf32>
    %117 = vector.broadcast %71 : vector<64x1xf32> to vector<64x32xf32>
    %118 = arith.mulf %117, %116 : vector<64x32xf32>
    %119 = arith.addf %114, %118 : vector<64x32xf32>
    %120 = vector.broadcast %80 : vector<64x1xf32> to vector<64x32xf32>
    %121 = arith.mulf %119, %120 : vector<64x32xf32>
    %c0_50 = arith.constant 0 : index
    %c0_51 = arith.constant 0 : index
    %122 = vector.load %arg3[%c0_50, %c0_51] : memref<64x32xf32, #tpu.memory_space<vmem>>, vector<64x32xf32>
    tpu.vector_store %arg3[%c0_50, %c0_51], %121 {strides = array<i32>} : memref<64x32xf32, #tpu.memory_space<vmem>>, vector<64x32xf32>,
    return
  }
  func.func @transform_0(%arg0: i32) -> (i32, i32, i32) {
    %c0_i32 = arith.constant 0 : i32
    %c0_i32_0 = arith.constant 0 : i32
    %c0_i32_1 = arith.constant 0 : i32
    return %c0_i32, %arg0, %c0_i32_0 : i32, i32, i32
  }
  func.func @transform_1(%arg0: i32) -> (i32, i32) {
    %c0_i32 = arith.constant 0 : i32
    %c0_i32_0 = arith.constant 0 : i32
    %c0_i32_1 = arith.constant 0 : i32
    return %c0_i32, %c0_i32_0 : i32, i32
  }
  func.func @transform_2(%arg0: i32) -> (i32, i32) {
    %c0_i32 = arith.constant 0 : i32
    %c0_i32_0 = arith.constant 0 : i32
    return %arg0, %c0_i32 : i32, i32
  }
}

</mosaic_0001>

<llo_original>
// kernel: tpu_custom_call.1
$region0: #{tpu_custom_call.1}
  #allocation0 [shape = 'u32[]', space=smem, size = 0x4, offset = 0x4, fixed_abs, tag = 'smem constant byte address 0x4 - core index']
  #allocation1 [shape = 'u32[144,128]{1,0:T(1,128)}', space=vmem, size = 0x12000, scoped, tag = 'internal scratch']
  %s0 = inlined_call_operand.vmem [shape: f32[8,256,32], index: 0, kind: input, shape index: {}]
  %s1 = inlined_call_operand.vmem [shape: f32[1,32], index: 1, kind: input, shape index: {}]
  %s2 = inlined_call_operand.vmem [shape: f32[256,32], index: 2, kind: output, shape index: {}]
  %s3 = sld [smem:[#allocation0]]
  $region79: #{tpu_custom_call.1} parent=0
    _
  %s5 = ssub.s32 1, %s3
  %s6 = scalar_select 0, %s5, %s3
  $region1: #{tpu_custom_call.1} parent=0
    #allocation2 [shape = 'u8[524288]{0}', space=vmem, size = 0x80000, scoped, tag = 'input window, operand 0']
    loop: start=0, step=1, limit=6
    $region2: #{tpu_custom_call.1} parent=1 // loop_pre_header
      _
    $region3: #{tpu_custom_call.1} parent=1 // loop_header
      %s8 = sphi 0, %s12
      %p9 = scmp.ge.s32.totalorder %s8, 6
      %s18 = sphi 0, %s20
      %s21 = sphi 0, %s18
      %s22 = sphi 0, %s21
      %s38 = sphi 0, %s22
      %s42 = sphi 0, %s42
      %s44 = sphi 0, %s42
      %s45 = sphi 0, %s44
      %s59 = sphi 0, %s45
      %s65 = sphi 0, %s67
      %s68 = sphi 0, %s65
      %s69 = sphi 0, %s68
      %s85 = sphi 0, %s69
    $region4: #{tpu_custom_call.1} parent=1 // loop_header_branch
      %11 = sbr.rel (%p9) target = $region8
    $region5: #{tpu_custom_call.1} parent=1 // loop_body
      %s13 = ssub.s32 %s8, 1
      %s14 = ssub.s32 %s8, 2
      %s15 = sadd.s32 %s8, 1
      %s16 = ssub.s32 %s8, %s15
      %p17 = scmp.eq.s32.totalorder %s16, 0
      %s19 = sadd.s32 %s18, 1
      %s20 = scalar_select %p17, %s18, %s19
      %p23 = pneg %p17
      %p24 = scmp.eq.s32.totalorder %s8, 3
      %p25 = por %p23, %p24
      %p26 = scmp.ne.s32.totalorder %s18, %s21
      %p27 = scmp.eq.s32.totalorder %s8, 0
      %p28 = por %p26, %p27
      %p29 = scmp.ne.s32.totalorder %s18, %s21
      %p30 = scmp.eq.s32.totalorder %s13, 3
      %p31 = por %p29, %p30
      %p32 = scmp.ne.s32.totalorder %s21, %s22
      %p33 = scmp.eq.s32.totalorder %s13, 0
      %p34 = por %p32, %p33
      %p35 = scmp.ne.s32.totalorder %s21, %s22
      %p36 = scmp.eq.s32.totalorder %s14, 3
      %p37 = por %p35, %p36
      %p39 = scmp.ne.s32.totalorder %s22, %s38
      %p40 = scmp.eq.s32.totalorder %s14, 0
      %p41 = por %p39, %p40
      %s43 = sadd.s32 %s42, 1
      %p46 = scmp.eq.s32.totalorder %s8, 3
      %p47 = scmp.ne.s32.totalorder %s42, %s44
      %p48 = scmp.eq.s32.totalorder %s8, 0
      %p49 = por %p47, %p48
      %p50 = scmp.ne.s32.totalorder %s42, %s44
      %p51 = scmp.eq.s32.totalorder %s13, 3
      %p52 = por %p50, %p51
      %p53 = scmp.ne.s32.totalorder %s44, %s45
      %p54 = scmp.eq.s32.totalorder %s13, 0
      %p55 = por %p53, %p54
      %p56 = scmp.ne.s32.totalorder %s44, %s45
      %p57 = scmp.eq.s32.totalorder %s14, 3
      %p58 = por %p56, %p57
      %p60 = scmp.ne.s32.totalorder %s45, %s59
      %p61 = scmp.eq.s32.totalorder %s14, 0
      %p62 = por %p60, %p61
      %s63 = ssub.s32 %s8, %s15
      %p64 = scmp.eq.s32.totalorder %s63, 0
      %s66 = sadd.s32 %s65, 1
      %s67 = scalar_select %p64, %s65, %s66
      %p70 = pneg %p64
      %p71 = scmp.eq.s32.totalorder %s8, 3
      %p72 = por %p70, %p71
      %p73 = scmp.ne.s32.totalorder %s65, %s68
      %p74 = scmp.eq.s32.totalorder %s8, 0
      %p75 = por %p73, %p74
      %p76 = scmp.ne.s32.totalorder %s65, %s68
      %p77 = scmp.eq.s32.totalorder %s13, 3
      %p78 = por %p76, %p77
      %p79 = scmp.ne.s32.totalorder %s68, %s69
      %p80 = scmp.eq.s32.totalorder %s13, 0
      %p81 = por %p79, %p80
      %p82 = scmp.ne.s32.totalorder %s68, %s69
      %p83 = scmp.eq.s32.totalorder %s14, 3
      %p84 = por %p82, %p83
      %p86 = scmp.ne.s32.totalorder %s69, %s85
      %p87 = scmp.eq.s32.totalorder %s14, 0
      %p88 = por %p86, %p87
      %p89 = scmp.le.s32.totalorder 1, %s8
      %p90 = scmp.lt.s32.totalorder %s8, 5
      %p91 = pnand %p89, %p90
      %p92 = pneg %p91
      // Predicated region
      $region9: #{tpu_custom_call.1} parent=5 // pred_check
        _
      $region10: #{tpu_custom_call.1} parent=5 // pred_check_branch
        %94 = sbr.rel (%p91) target = $region12
      $region11: #{tpu_custom_call.1} parent=5 // pred_region
        %s95 = ssub.s32 %s8, 1
        // Predicated region
        $region13: #{tpu_custom_call.1} parent=11 // pred_check
          %p96 = pneg %p55
        $region14: #{tpu_custom_call.1} parent=11 // pred_check_branch
          %98 = sbr.rel (%p96) target = $region16
        $region15: #{tpu_custom_call.1} parent=11 // pred_region
          _
        $region16: #{tpu_custom_call.1} parent=11 // pred_fallthru
          _
      $region12: #{tpu_custom_call.1} parent=5 // pred_fallthru
        _
      %p99 = scmp.lt.s32.totalorder %s8, 4
      // Predicated region
      $region17: #{tpu_custom_call.1} parent=5 // pred_check
        %p100 = pneg %p99
      $region18: #{tpu_custom_call.1} parent=5 // pred_check_branch
        %102 = sbr.rel (%p100) target = $region20
      $region19: #{tpu_custom_call.1} parent=5 // pred_region
        // Predicated region
        $region21: #{tpu_custom_call.1} parent=19 // pred_check
          %p103 = pneg %p28
        $region22: #{tpu_custom_call.1} parent=19 // pred_check_branch
          %105 = sbr.rel (%p103) target = $region24
        $region23: #{tpu_custom_call.1} parent=19 // pred_region
          %s106 = sand.u32 %s18, 1
          %s107 = sand.u32 %s18, 1
          %s108 = smul.addr %s107, 512
          %s109 = scalar_lea.vmem [#allocation2], %s108
          %s110 = smul.u32 8, %s8
          %s111 = smul.addr %s110, 8
          %s112 = scalar_lea.vmem %s0, %s111
          // Predicated region
          $region25: #{tpu_custom_call.1} parent=23 // pred_check
            _
          $region26: #{tpu_custom_call.1} parent=23 // pred_check_branch
            %114 = sbr.rel (0) target = $region28
          $region27: #{tpu_custom_call.1} parent=23 // pred_region
            // Predicated region
            $region29: #{tpu_custom_call.1} parent=27 // pred_check
              _
            $region30: #{tpu_custom_call.1} parent=27 // pred_check_branch
              %116 = sbr.rel (0) target = $region32
            $region31: #{tpu_custom_call.1} parent=27 // pred_region
              // Predicated region
              $region44: #{tpu_custom_call.1} parent=31 // pred_check
                _
              $region45: #{tpu_custom_call.1} parent=31 // pred_check_branch
                %257 = sbr.rel (0) target = $region47
              $region46: #{tpu_custom_call.1} parent=31 // pred_region
                loop: start=0, step=1, limit=1
                $region48: #{tpu_custom_call.1} parent=46 // loop_pre_header
                  _
                $region49: #{tpu_custom_call.1} parent=46 // loop_header
                  %s259 = sphi 0, %s263
                  %p260 = scmp.ge.s32.totalorder %s259, 1
                  %s264 = sphi %s112, %s112
                  %s265 = sphi %s109, %s109
                $region50: #{tpu_custom_call.1} parent=46 // loop_header_branch
                  %262 = sbr.rel (%p260) target = $region54
                $region51: #{tpu_custom_call.1} parent=46 // loop_body
                  %v266 = vld [vmem:[%s264] sm:$0xff]
                  %267 = vst [vmem:[%s265] sm:$0xff] %v266
                  %v268 = vld [vmem:[%s264 + $0x8] sm:$0xff]
                  %269 = vst [vmem:[%s265 + $0x8] sm:$0xff] %v268
                  %v270 = vld [vmem:[%s264 + $0x10] sm:$0xff]
                  %271 = vst [vmem:[%s265 + $0x10] sm:$0xff] %v270
                  %v272 = vld [vmem:[%s264 + $0x18] sm:$0xff]
                  %273 = vst [vmem:[%s265 + $0x18] sm:$0xff] %v272
                  %v274 = vld [vmem:[%s264 + $0x20] sm:$0xff]
                  %275 = vst [vmem:[%s265 + $0x20] sm:$0xff] %v274
                  %v276 = vld [vmem:[%s264 + $0x28] sm:$0xff]
                  %277 = vst [vmem:[%s265 + $0x28] sm:$0xff] %v276
                  %v278 = vld [vmem:[%s264 + $0x30] sm:$0xff]
                  %279 = vst [vmem:[%s265 + $0x30] sm:$0xff] %v278
                  %v280 = vld [vmem:[%s264 + $0x38] sm:$0xff]
                  %281 = vst [vmem:[%s265 + $0x38] sm:$0xff] %v280
                  %v282 = vld [vmem:[%s264 + $0x100] sm:$0xff]
                  %283 = vst [vmem:[%s265 + $0x40] sm:$0xff] %v282
                  %v284 = vld [vmem:[%s264 + $0x108] sm:$0xff]
                  %285 = vst [vmem:[%s265 + $0x48] sm:$0xff] %v284
                  %v286 = vld [vmem:[%s264 + $0x110] sm:$0xff]
                  %287 = vst [vmem:[%s265 + $0x50] sm:$0xff] %v286
                  %v288 = vld [vmem:[%s264 + $0x118] sm:$0xff]
                  %289 = vst [vmem:[%s265 + $0x58] sm:$0xff] %v288
                  %v290 = vld [vmem:[%s264 + $0x120] sm:$0xff]
                  %291 = vst [vmem:[%s265 + $0x60] sm:$0xff] %v290
                  %v292 = vld [vmem:[%s264 + $0x128] sm:$0xff]
                  %293 = vst [vmem:[%s265 + $0x68] sm:$0xff] %v292
                  %v294 = vld [vmem:[%s264 + $0x130] sm:$0xff]
                  %295 = vst [vmem:[%s265 + $0x70] sm:$0xff] %v294
                  %v296 = vld [vmem:[%s264 + $0x138] sm:$0xff]
                  %297 = vst [vmem:[%s265 + $0x78] sm:$0xff] %v296
                  %v298 = vld [vmem:[%s264 + $0x200] sm:$0xff]
                  %299 = vst [vmem:[%s265 + $0x80] sm:$0xff] %v298
                  %v300 = vld [vmem:[%s264 + $0x208] sm:$0xff]
                  %301 = vst [vmem:[%s265 + $0x88] sm:$0xff] %v300
                  %v302 = vld [vmem:[%s264 + $0x210] sm:$0xff]
                  %303 = vst [vmem:[%s265 + $0x90] sm:$0xff] %v302
                  %v304 = vld [vmem:[%s264 + $0x218] sm:$0xff]
                  %305 = vst [vmem:[%s265 + $0x98] sm:$0xff] %v304
                  %v306 = vld [vmem:[%s264 + $0x220] sm:$0xff]
                  %307 = vst [vmem:[%s265 + $0xa0] sm:$0xff] %v306
                  %v308 = vld [vmem:[%s264 + $0x228] sm:$0xff]
                  %309 = vst [vmem:[%s265 + $0xa8] sm:$0xff] %v308
                  %v310 = vld [vmem:[%s264 + $0x230] sm:$0xff]
                  %311 = vst [vmem:[%s265 + $0xb0] sm:$0xff] %v310
                  %v312 = vld [vmem:[%s264 + $0x238] sm:$0xff]
                  %313 = vst [vmem:[%s265 + $0xb8] sm:$0xff] %v312
                  %v314 = vld [vmem:[%s264 + $0x300] sm:$0xff]
                  %315 = vst [vmem:[%s265 + $0xc0] sm:$0xff] %v314
                  %v316 = vld [vmem:[%s264 + $0x308] sm:$0xff]
                  %317 = vst [vmem:[%s265 + $0xc8] sm:$0xff] %v316
                  %v318 = vld [vmem:[%s264 + $0x310] sm:$0xff]
                  %319 = vst [vmem:[%s265 + $0xd0] sm:$0xff] %v318
                  %v320 = vld [vmem:[%s264 + $0x318] sm:$0xff]
                  %321 = vst [vmem:[%s265 + $0xd8] sm:$0xff] %v320
                  %v322 = vld [vmem:[%s264 + $0x320] sm:$0xff]
                  %323 = vst [vmem:[%s265 + $0xe0] sm:$0xff] %v322
                  %v324 = vld [vmem:[%s264 + $0x328] sm:$0xff]
                  %325 = vst [vmem:[%s265 + $0xe8] sm:$0xff] %v324
                  %v326 = vld [vmem:[%s264 + $0x330] sm:$0xff]
                  %327 = vst [vmem:[%s265 + $0xf0] sm:$0xff] %v326
                  %v328 = vld [vmem:[%s264 + $0x338] sm:$0xff]
                  %329 = vst [vmem:[%s265 + $0xf8] sm:$0xff] %v328
                  %v330 = vld [vmem:[%s264 + $0x400] sm:$0xff]
                  %331 = vst [vmem:[%s265 + $0x100] sm:$0xff] %v330
                  %v332 = vld [vmem:[%s264 + $0x408] sm:$0xff]
                  %333 = vst [vmem:[%s265 + $0x108] sm:$0xff] %v332
                  %v334 = vld [vmem:[%s264 + $0x410] sm:$0xff]
                  %335 = vst [vmem:[%s265 + $0x110] sm:$0xff] %v334
                  %v336 = vld [vmem:[%s264 + $0x418] sm:$0xff]
                  %337 = vst [vmem:[%s265 + $0x118] sm:$0xff] %v336
                  %v338 = vld [vmem:[%s264 + $0x420] sm:$0xff]
                  %339 = vst [vmem:[%s265 + $0x120] sm:$0xff] %v338
                  %v340 = vld [vmem:[%s264 + $0x428] sm:$0xff]
                  %341 = vst [vmem:[%s265 + $0x128] sm:$0xff] %v340
                  %v342 = vld [vmem:[%s264 + $0x430] sm:$0xff]
                  %343 = vst [vmem:[%s265 + $0x130] sm:$0xff] %v342
                  %v344 = vld [vmem:[%s264 + $0x438] sm:$0xff]
                  %345 = vst [vmem:[%s265 + $0x138] sm:$0xff] %v344
                  %v346 = vld [vmem:[%s264 + $0x500] sm:$0xff]
                  %347 = vst [vmem:[%s265 + $0x140] sm:$0xff] %v346
                  %v348 = vld [vmem:[%s264 + $0x508] sm:$0xff]
                  %349 = vst [vmem:[%s265 + $0x148] sm:$0xff] %v348
                  %v350 = vld [vmem:[%s264 + $0x510] sm:$0xff]
                  %351 = vst [vmem:[%s265 + $0x150] sm:$0xff] %v350
                  %v352 = vld [vmem:[%s264 + $0x518] sm:$0xff]
                  %353 = vst [vmem:[%s265 + $0x158] sm:$0xff] %v352
                  %v354 = vld [vmem:[%s264 + $0x520] sm:$0xff]
                  %355 = vst [vmem:[%s265 + $0x160] sm:$0xff] %v354
                  %v356 = vld [vmem:[%s264 + $0x528] sm:$0xff]
                  %357 = vst [vmem:[%s265 + $0x168] sm:$0xff] %v356
                  %v358 = vld [vmem:[%s264 + $0x530] sm:$0xff]
                  %359 = vst [vmem:[%s265 + $0x170] sm:$0xff] %v358
                  %v360 = vld [vmem:[%s264 + $0x538] sm:$0xff]
                  %361 = vst [vmem:[%s265 + $0x178] sm:$0xff] %v360
                  %v362 = vld [vmem:[%s264 + $0x600] sm:$0xff]
                  %363 = vst [vmem:[%s265 + $0x180] sm:$0xff] %v362
                  %v364 = vld [vmem:[%s264 + $0x608] sm:$0xff]
                  %365 = vst [vmem:[%s265 + $0x188] sm:$0xff] %v364
                  %v366 = vld [vmem:[%s264 + $0x610] sm:$0xff]
                  %367 = vst [vmem:[%s265 + $0x190] sm:$0xff] %v366
                  %v368 = vld [vmem:[%s264 + $0x618] sm:$0xff]
                  %369 = vst [vmem:[%s265 + $0x198] sm:$0xff] %v368
                  %v370 = vld [vmem:[%s264 + $0x620] sm:$0xff]
                  %371 = vst [vmem:[%s265 + $0x1a0] sm:$0xff] %v370
                  %v372 = vld [vmem:[%s264 + $0x628] sm:$0xff]
                  %373 = vst [vmem:[%s265 + $0x1a8] sm:$0xff] %v372
                  %v374 = vld [vmem:[%s264 + $0x630] sm:$0xff]
                  %375 = vst [vmem:[%s265 + $0x1b0] sm:$0xff] %v374
                  %v376 = vld [vmem:[%s264 + $0x638] sm:$0xff]
                  %377 = vst [vmem:[%s265 + $0x1b8] sm:$0xff] %v376
                  %v378 = vld [vmem:[%s264 + $0x700] sm:$0xff]
                  %379 = vst [vmem:[%s265 + $0x1c0] sm:$0xff] %v378
                  %v380 = vld [vmem:[%s264 + $0x708] sm:$0xff]
                  %381 = vst [vmem:[%s265 + $0x1c8] sm:$0xff] %v380
                  %v382 = vld [vmem:[%s264 + $0x710] sm:$0xff]
                  %383 = vst [vmem:[%s265 + $0x1d0] sm:$0xff] %v382
                  %v384 = vld [vmem:[%s264 + $0x718] sm:$0xff]
                  %385 = vst [vmem:[%s265 + $0x1d8] sm:$0xff] %v384
                  %v386 = vld [vmem:[%s264 + $0x720] sm:$0xff]
                  %387 = vst [vmem:[%s265 + $0x1e0] sm:$0xff] %v386
                  %v388 = vld [vmem:[%s264 + $0x728] sm:$0xff]
                  %389 = vst [vmem:[%s265 + $0x1e8] sm:$0xff] %v388
                  %v390 = vld [vmem:[%s264 + $0x730] sm:$0xff]
                  %391 = vst [vmem:[%s265 + $0x1f0] sm:$0xff] %v390
                  %v392 = vld [vmem:[%s264 + $0x738] sm:$0xff]
                  %393 = vst [vmem:[%s265 + $0x1f8] sm:$0xff] %v392
                $region52: #{tpu_custom_call.1} parent=46 // loop_footer
                  %s263 = sadd.s32 1, %s259
                $region53: #{tpu_custom_call.1} parent=46 // loop_footer_branch
                  %258 = sbr.rel target = $region49
                $region54: #{tpu_custom_call.1} parent=46 // loop_exit
                  _
              $region47: #{tpu_custom_call.1} parent=31 // pred_fallthru
                _
              // Predicated region
              $region55: #{tpu_custom_call.1} parent=31 // pred_check
                _
              $region56: #{tpu_custom_call.1} parent=31 // pred_check_branch
                %395 = sbr.rel target = $region58
              $region57: #{tpu_custom_call.1} parent=31 // pred_region
                _
              $region58: #{tpu_custom_call.1} parent=31 // pred_fallthru
                _
            $region32: #{tpu_custom_call.1} parent=27 // pred_fallthru
              _
            // Predicated region
            $region33: #{tpu_custom_call.1} parent=27 // pred_check
              _
            $region34: #{tpu_custom_call.1} parent=27 // pred_check_branch
              %118 = sbr.rel target = $region36
            $region35: #{tpu_custom_call.1} parent=27 // pred_region
              loop: start=0, step=1, limit=1
              $region37: #{tpu_custom_call.1} parent=35 // loop_pre_header
                _
              $region38: #{tpu_custom_call.1} parent=35 // loop_header
                %s121 = sphi 0, %s125
                %p122 = scmp.ge.s32.totalorder %s121, 1
                %s126 = sphi %s112, %s112
                %s127 = sphi %s109, %s109
              $region39: #{tpu_custom_call.1} parent=35 // loop_header_branch
                %124 = sbr.rel (%p122) target = $region43
              $region40: #{tpu_custom_call.1} parent=35 // loop_body
                %v128 = vld [vmem:[%s126] sm:$0xff]
                %129 = vst [vmem:[%s127] sm:$0xff] %v128
                %v130 = vld [vmem:[%s126 + $0x8] sm:$0xff]
                %131 = vst [vmem:[%s127 + $0x8] sm:$0xff] %v130
                %v132 = vld [vmem:[%s126 + $0x10] sm:$0xff]
                %133 = vst [vmem:[%s127 + $0x10] sm:$0xff] %v132
                %v134 = vld [vmem:[%s126 + $0x18] sm:$0xff]
                %135 = vst [vmem:[%s127 + $0x18] sm:$0xff] %v134
                %v136 = vld [vmem:[%s126 + $0x20] sm:$0xff]
                %137 = vst [vmem:[%s127 + $0x20] sm:$0xff] %v136
                %v138 = vld [vmem:[%s126 + $0x28] sm:$0xff]
                %139 = vst [vmem:[%s127 + $0x28] sm:$0xff] %v138
                %v140 = vld [vmem:[%s126 + $0x30] sm:$0xff]
                %141 = vst [vmem:[%s127 + $0x30] sm:$0xff] %v140
                %v142 = vld [vmem:[%s126 + $0x38] sm:$0xff]
                %143 = vst [vmem:[%s127 + $0x38] sm:$0xff] %v142
                %v144 = vld [vmem:[%s126 + $0x100] sm:$0xff]
                %145 = vst [vmem:[%s127 + $0x40] sm:$0xff] %v144
                %v146 = vld [vmem:[%s126 + $0x108] sm:$0xff]
                %147 = vst [vmem:[%s127 + $0x48] sm:$0xff] %v146
                %v148 = vld [vmem:[%s126 + $0x110] sm:$0xff]
                %149 = vst [vmem:[%s127 + $0x50] sm:$0xff] %v148
                %v150 = vld [vmem:[%s126 + $0x118] sm:$0xff]
                %151 = vst [vmem:[%s127 + $0x58] sm:$0xff] %v150
                %v152 = vld [vmem:[%s126 + $0x120] sm:$0xff]
                %153 = vst [vmem:[%s127 + $0x60] sm:$0xff] %v152
                %v154 = vld [vmem:[%s126 + $0x128] sm:$0xff]
                %155 = vst [vmem:[%s127 + $0x68] sm:$0xff] %v154
                %v156 = vld [vmem:[%s126 + $0x130] sm:$0xff]
                %157 = vst [vmem:[%s127 + $0x70] sm:$0xff] %v156
                %v158 = vld [vmem:[%s126 + $0x138] sm:$0xff]
                %159 = vst [vmem:[%s127 + $0x78] sm:$0xff] %v158
                %v160 = vld [vmem:[%s126 + $0x200] sm:$0xff]
                %161 = vst [vmem:[%s127 + $0x80] sm:$0xff] %v160
                %v162 = vld [vmem:[%s126 + $0x208] sm:$0xff]
                %163 = vst [vmem:[%s127 + $0x88] sm:$0xff] %v162
                %v164 = vld [vmem:[%s126 + $0x210] sm:$0xff]
                %165 = vst [vmem:[%s127 + $0x90] sm:$0xff] %v164
                %v166 = vld [vmem:[%s126 + $0x218] sm:$0xff]
                %167 = vst [vmem:[%s127 + $0x98] sm:$0xff] %v166
                %v168 = vld [vmem:[%s126 + $0x220] sm:$0xff]
                %169 = vst [vmem:[%s127 + $0xa0] sm:$0xff] %v168
                %v170 = vld [vmem:[%s126 + $0x228] sm:$0xff]
                %171 = vst [vmem:[%s127 + $0xa8] sm:$0xff] %v170
                %v172 = vld [vmem:[%s126 + $0x230] sm:$0xff]
                %173 = vst [vmem:[%s127 + $0xb0] sm:$0xff] %v172
                %v174 = vld [vmem:[%s126 + $0x238] sm:$0xff]
                %175 = vst [vmem:[%s127 + $0xb8] sm:$0xff] %v174
                %v176 = vld [vmem:[%s126 + $0x300] sm:$0xff]
                %177 = vst [vmem:[%s127 + $0xc0] sm:$0xff] %v176
                %v178 = vld [vmem:[%s126 + $0x308] sm:$0xff]
                %179 = vst [vmem:[%s127 + $0xc8] sm:$0xff] %v178
                %v180 = vld [vmem:[%s126 + $0x310] sm:$0xff]
                %181 = vst [vmem:[%s127 + $0xd0] sm:$0xff] %v180
                %v182 = vld [vmem:[%s126 + $0x318] sm:$0xff]
                %183 = vst [vmem:[%s127 + $0xd8] sm:$0xff] %v182
                %v184 = vld [vmem:[%s126 + $0x320] sm:$0xff]
                %185 = vst [vmem:[%s127 + $0xe0] sm:$0xff] %v184
                %v186 = vld [vmem:[%s126 + $0x328] sm:$0xff]
                %187 = vst [vmem:[%s127 + $0xe8] sm:$0xff] %v186
                %v188 = vld [vmem:[%s126 + $0x330] sm:$0xff]
                %189 = vst [vmem:[%s127 + $0xf0] sm:$0xff] %v188
                %v190 = vld [vmem:[%s126 + $0x338] sm:$0xff]
                %191 = vst [vmem:[%s127 + $0xf8] sm:$0xff] %v190
                %v192 = vld [vmem:[%s126 + $0x400] sm:$0xff]
                %193 = vst [vmem:[%s127 + $0x100] sm:$0xff] %v192
                %v194 = vld [vmem:[%s126 + $0x408] sm:$0xff]
                %195 = vst [vmem:[%s127 + $0x108] sm:$0xff] %v194
                %v196 = vld [vmem:[%s126 + $0x410] sm:$0xff]
                %197 = vst [vmem:[%s127 + $0x110] sm:$0xff] %v196
                %v198 = vld [vmem:[%s126 + $0x418] sm:$0xff]
                %199 = vst [vmem:[%s127 + $0x118] sm:$0xff] %v198
                %v200 = vld [vmem:[%s126 + $0x420] sm:$0xff]
                %201 = vst [vmem:[%s127 + $0x120] sm:$0xff] %v200
                %v202 = vld [vmem:[%s126 + $0x428] sm:$0xff]
                %203 = vst [vmem:[%s127 + $0x128] sm:$0xff] %v202
                %v204 = vld [vmem:[%s126 + $0x430] sm:$0xff]
                %205 = vst [vmem:[%s127 + $0x130] sm:$0xff] %v204
                %v206 = vld [vmem:[%s126 + $0x438] sm:$0xff]
                %207 = vst [vmem:[%s127 + $0x138] sm:$0xff] %v206
                %v208 = vld [vmem:[%s126 + $0x500] sm:$0xff]
                %209 = vst [vmem:[%s127 + $0x140] sm:$0xff] %v208
                %v210 = vld [vmem:[%s126 + $0x508] sm:$0xff]
                %211 = vst [vmem:[%s127 + $0x148] sm:$0xff] %v210
                %v212 = vld [vmem:[%s126 + $0x510] sm:$0xff]
                %213 = vst [vmem:[%s127 + $0x150] sm:$0xff] %v212
                %v214 = vld [vmem:[%s126 + $0x518] sm:$0xff]
                %215 = vst [vmem:[%s127 + $0x158] sm:$0xff] %v214
                %v216 = vld [vmem:[%s126 + $0x520] sm:$0xff]
                %217 = vst [vmem:[%s127 + $0x160] sm:$0xff] %v216
                %v218 = vld [vmem:[%s126 + $0x528] sm:$0xff]
                %219 = vst [vmem:[%s127 + $0x168] sm:$0xff] %v218
                %v220 = vld [vmem:[%s126 + $0x530] sm:$0xff]
                %221 = vst [vmem:[%s127 + $0x170] sm:$0xff] %v220
                %v222 = vld [vmem:[%s126 + $0x538] sm:$0xff]
                %223 = vst [vmem:[%s127 + $0x178] sm:$0xff] %v222
                %v224 = vld [vmem:[%s126 + $0x600] sm:$0xff]
                %225 = vst [vmem:[%s127 + $0x180] sm:$0xff] %v224
                %v226 = vld [vmem:[%s126 + $0x608] sm:$0xff]
                %227 = vst [vmem:[%s127 + $0x188] sm:$0xff] %v226
                %v228 = vld [vmem:[%s126 + $0x610] sm:$0xff]
                %229 = vst [vmem:[%s127 + $0x190] sm:$0xff] %v228
                %v230 = vld [vmem:[%s126 + $0x618] sm:$0xff]
                %231 = vst [vmem:[%s127 + $0x198] sm:$0xff] %v230
                %v232 = vld [vmem:[%s126 + $0x620] sm:$0xff]
                %233 = vst [vmem:[%s127 + $0x1a0] sm:$0xff] %v232
                %v234 = vld [vmem:[%s126 + $0x628] sm:$0xff]
                %235 = vst [vmem:[%s127 + $0x1a8] sm:$0xff] %v234
                %v236 = vld [vmem:[%s126 + $0x630] sm:$0xff]
                %237 = vst [vmem:[%s127 + $0x1b0] sm:$0xff] %v236
                %v238 = vld [vmem:[%s126 + $0x638] sm:$0xff]
                %239 = vst [vmem:[%s127 + $0x1b8] sm:$0xff] %v238
                %v240 = vld [vmem:[%s126 + $0x700] sm:$0xff]
                %241 = vst [vmem:[%s127 + $0x1c0] sm:$0xff] %v240
                %v242 = vld [vmem:[%s126 + $0x708] sm:$0xff]
                %243 = vst [vmem:[%s127 + $0x1c8] sm:$0xff] %v242
                %v244 = vld [vmem:[%s126 + $0x710] sm:$0xff]
                %245 = vst [vmem:[%s127 + $0x1d0] sm:$0xff] %v244
                %v246 = vld [vmem:[%s126 + $0x718] sm:$0xff]
                %247 = vst [vmem:[%s127 + $0x1d8] sm:$0xff] %v246
                %v248 = vld [vmem:[%s126 + $0x720] sm:$0xff]
                %249 = vst [vmem:[%s127 + $0x1e0] sm:$0xff] %v248
                %v250 = vld [vmem:[%s126 + $0x728] sm:$0xff]
                %251 = vst [vmem:[%s127 + $0x1e8] sm:$0xff] %v250
                %v252 = vld [vmem:[%s126 + $0x730] sm:$0xff]
                %253 = vst [vmem:[%s127 + $0x1f0] sm:$0xff] %v252
                %v254 = vld [vmem:[%s126 + $0x738] sm:$0xff]
                %255 = vst [vmem:[%s127 + $0x1f8] sm:$0xff] %v254
              $region41: #{tpu_custom_call.1} parent=35 // loop_footer
                %s125 = sadd.s32 1, %s121
              $region42: #{tpu_custom_call.1} parent=35 // loop_footer_branch
                %120 = sbr.rel target = $region38
              $region43: #{tpu_custom_call.1} parent=35 // loop_exit
                _
            $region36: #{tpu_custom_call.1} parent=27 // pred_fallthru
              _
          $region28: #{tpu_custom_call.1} parent=23 // pred_fallthru
            _
          %396 = vnop
        $region24: #{tpu_custom_call.1} parent=19 // pred_fallthru
          _
      $region20: #{tpu_custom_call.1} parent=5 // pred_fallthru
        _
      %p397 = scmp.le.s32.totalorder 1, %s8
      %p398 = scmp.lt.s32.totalorder %s8, 5
      %p399 = pnand %p397, %p398
      %p400 = pneg %p399
      // Predicated region
      $region59: #{tpu_custom_call.1} parent=5 // pred_check
        _
      $region60: #{tpu_custom_call.1} parent=5 // pred_check_branch
        %402 = sbr.rel (%p399) target = $region62
      $region61: #{tpu_custom_call.1} parent=5 // pred_region
        %s403 = ssub.s32 %s8, 1
        %s404 = sand.u32 %s21, 1
        %s405 = sand.u32 %s21, 1
        %s406 = smul.addr %s405, 512
        %s407 = scalar_lea.vmem [#allocation2], %s406
        // Predicated region
        $region63: #{tpu_custom_call.1} parent=61 // pred_check
          %p408 = pneg %p34
        $region64: #{tpu_custom_call.1} parent=61 // pred_check_branch
          %410 = sbr.rel (%p408) target = $region66
        $region65: #{tpu_custom_call.1} parent=61 // pred_region
          _
        $region66: #{tpu_custom_call.1} parent=61 // pred_fallthru
          _
        %s411 = sand.u32 %s21, 1
        %s412 = sand.u32 %s21, 1
        %s413 = smul.addr %s412, 512
        %s414 = scalar_lea.vmem [#allocation2], %s413
        %p415 = pneg %p34
        %p416 = pneg %p31
        %p417 = pneg %p55
        %p418 = pneg %p52
        %p419 = pneg %p81
        %p420 = pneg %p78
        %s421 = smul.u32 8, %s13
        %p422 = scmp.lt.s32.totalorder %s421, 31
        %s423 = scalar_select %p422, %s421, 31
        %s424 = smul.addr %s423, 8
        %s425 = scalar_lea.vmem %s2, %s424
        %s426 = smul.u32 8, %s13
        %s427 = smul.u32 8, %s13
        %p428 = scmp.lt.s32.totalorder %s427, 31
        %s429 = scalar_select %p428, %s427, 31
        %s430 = smul.addr %s429, 8
        %s431 = scalar_lea.vmem %s2, %s430
        %s432 = smul.u32 8, %s13
        %v433 = vld [vmem:[%s1] sm:$0x1]
        %v434 = vld [vmem:[%s407] sm:$0xff]
        %v435 = vld [vmem:[%s407 + $0x8] sm:$0xff]
        %v436 = vld [vmem:[%s407 + $0x10] sm:$0xff]
        %v437 = vld [vmem:[%s407 + $0x18] sm:$0xff]
        %v438 = vld [vmem:[%s407 + $0x20] sm:$0xff]
        %v439 = vld [vmem:[%s407 + $0x28] sm:$0xff]
        %v440 = vld [vmem:[%s407 + $0x30] sm:$0xff]
        %v441 = vld [vmem:[%s407 + $0x38] sm:$0xff]
        %v443 = vlaneseq
        %v444 = vshrl.u32 %v443, 7
        %v445 = vsub.s32 0, %v444
        %v446 = vrot.slane %v433, %v445
        %v448 = vmul.f32 %v434, %v446
        %v449 = vmul.f32 %v435, %v446
        %v450 = vmul.f32 %v436, %v446
        %v451 = vmul.f32 %v437, %v446
        %v452 = vmul.f32 %v438, %v446
        %v453 = vmul.f32 %v439, %v446
        %v454 = vmul.f32 %v440, %v446
        %v455 = vmul.f32 %v441, %v446
        %vm456 = vcmask 261120
        %v457 = vsel %vm456, %v448, 0.0
        %458 = vadd.xlane.f32.xlu0 %v457
        %v459 = vpop.xlane.xlu0 %458
        %v460 = vsel %vm456, %v449, 0.0
        %461 = vadd.xlane.f32.xlu0 %v460
        %v462 = vpop.xlane.xlu0 %461
        %v463 = vsel %vm456, %v450, 0.0
        %464 = vadd.xlane.f32.xlu0 %v463
        %v465 = vpop.xlane.xlu0 %464
        %v466 = vsel %vm456, %v451, 0.0
        %467 = vadd.xlane.f32.xlu0 %v466
        %v468 = vpop.xlane.xlu0 %467
        %v469 = vsel %vm456, %v452, 0.0
        %470 = vadd.xlane.f32.xlu0 %v469
        %v471 = vpop.xlane.xlu0 %470
        %v472 = vsel %vm456, %v453, 0.0
        %473 = vadd.xlane.f32.xlu0 %v472
        %v474 = vpop.xlane.xlu0 %473
        %v475 = vsel %vm456, %v454, 0.0
        %476 = vadd.xlane.f32.xlu0 %v475
        %v477 = vpop.xlane.xlu0 %476
        %v478 = vsel %vm456, %v455, 0.0
        %479 = vadd.xlane.f32.xlu0 %v478
        %v480 = vpop.xlane.xlu0 %479
        %s481 = scalar_lea.vmem %s407, 64 [#allocation2]
        %v482 = vld [vmem:[%s481] sm:$0xff]
        %v483 = vld [vmem:[%s481 + $0x8] sm:$0xff]
        %v484 = vld [vmem:[%s481 + $0x10] sm:$0xff]
        %v485 = vld [vmem:[%s481 + $0x18] sm:$0xff]
        %v486 = vld [vmem:[%s481 + $0x20] sm:$0xff]
        %v487 = vld [vmem:[%s481 + $0x28] sm:$0xff]
        %v488 = vld [vmem:[%s481 + $0x30] sm:$0xff]
        %v489 = vld [vmem:[%s481 + $0x38] sm:$0xff]
        %v490 = vmul.f32 %v482, %v446
        %v491 = vmul.f32 %v483, %v446
        %v492 = vmul.f32 %v484, %v446
        %v493 = vmul.f32 %v485, %v446
        %v494 = vmul.f32 %v486, %v446
        %v495 = vmul.f32 %v487, %v446
        %v496 = vmul.f32 %v488, %v446
        %v497 = vmul.f32 %v489, %v446
        %v498 = vsel %vm456, %v490, 0.0
        %499 = vadd.xlane.f32.xlu0 %v498
        %v500 = vpop.xlane.xlu0 %499
        %v501 = vsel %vm456, %v491, 0.0
        %502 = vadd.xlane.f32.xlu0 %v501
        %v503 = vpop.xlane.xlu0 %502
        %v504 = vsel %vm456, %v492, 0.0
        %505 = vadd.xlane.f32.xlu0 %v504
        %v506 = vpop.xlane.xlu0 %505
        %v507 = vsel %vm456, %v493, 0.0
        %508 = vadd.xlane.f32.xlu0 %v507
        %v509 = vpop.xlane.xlu0 %508
        %v510 = vsel %vm456, %v494, 0.0
        %511 = vadd.xlane.f32.xlu0 %v510
        %v512 = vpop.xlane.xlu0 %511
        %v513 = vsel %vm456, %v495, 0.0
        %514 = vadd.xlane.f32.xlu0 %v513
        %v515 = vpop.xlane.xlu0 %514
        %v516 = vsel %vm456, %v496, 0.0
        %517 = vadd.xlane.f32.xlu0 %v516
        %v518 = vpop.xlane.xlu0 %517
        %v519 = vsel %vm456, %v497, 0.0
        %520 = vadd.xlane.f32.xlu0 %v519
        %v521 = vpop.xlane.xlu0 %520
        %s522 = scalar_lea.vmem %s407, 128 [#allocation2]
        %v523 = vld [vmem:[%s522] sm:$0xff]
        %v524 = vld [vmem:[%s522 + $0x8] sm:$0xff]
        %v525 = vld [vmem:[%s522 + $0x10] sm:$0xff]
        %v526 = vld [vmem:[%s522 + $0x18] sm:$0xff]
        %v527 = vld [vmem:[%s522 + $0x20] sm:$0xff]
        %v528 = vld [vmem:[%s522 + $0x28] sm:$0xff]
        %v529 = vld [vmem:[%s522 + $0x30] sm:$0xff]
        %v530 = vld [vmem:[%s522 + $0x38] sm:$0xff]
        %v531 = vmul.f32 %v523, %v446
        %v532 = vmul.f32 %v524, %v446
        %v533 = vmul.f32 %v525, %v446
        %v534 = vmul.f32 %v526, %v446
        %v535 = vmul.f32 %v527, %v446
        %v536 = vmul.f32 %v528, %v446
        %v537 = vmul.f32 %v529, %v446
        %v538 = vmul.f32 %v530, %v446
        %v539 = vsel %vm456, %v531, 0.0
        %540 = vadd.xlane.f32.xlu0 %v539
        %v541 = vpop.xlane.xlu0 %540
        %v542 = vsel %vm456, %v532, 0.0
        %543 = vadd.xlane.f32.xlu0 %v542
        %v544 = vpop.xlane.xlu0 %543
        %v545 = vsel %vm456, %v533, 0.0
        %546 = vadd.xlane.f32.xlu0 %v545
        %v547 = vpop.xlane.xlu0 %546
        %v548 = vsel %vm456, %v534, 0.0
        %549 = vadd.xlane.f32.xlu0 %v548
        %v550 = vpop.xlane.xlu0 %549
        %v551 = vsel %vm456, %v535, 0.0
        %552 = vadd.xlane.f32.xlu0 %v551
        %v553 = vpop.xlane.xlu0 %552
        %v554 = vsel %vm456, %v536, 0.0
        %555 = vadd.xlane.f32.xlu0 %v554
        %v556 = vpop.xlane.xlu0 %555
        %v557 = vsel %vm456, %v537, 0.0
        %558 = vadd.xlane.f32.xlu0 %v557
        %v559 = vpop.xlane.xlu0 %558
        %v560 = vsel %vm456, %v538, 0.0
        %561 = vadd.xlane.f32.xlu0 %v560
        %v562 = vpop.xlane.xlu0 %561
        %s563 = scalar_lea.vmem %s407, 192 [#allocation2]
        %v564 = vld [vmem:[%s563] sm:$0xff]
        %v565 = vld [vmem:[%s563 + $0x8] sm:$0xff]
        %v566 = vld [vmem:[%s563 + $0x10] sm:$0xff]
        %v567 = vld [vmem:[%s563 + $0x18] sm:$0xff]
        %v568 = vld [vmem:[%s563 + $0x20] sm:$0xff]
        %v569 = vld [vmem:[%s563 + $0x28] sm:$0xff]
        %v570 = vld [vmem:[%s563 + $0x30] sm:$0xff]
        %v571 = vld [vmem:[%s563 + $0x38] sm:$0xff]
        %v572 = vmul.f32 %v564, %v446
        %v573 = vmul.f32 %v565, %v446
        %v574 = vmul.f32 %v566, %v446
        %v575 = vmul.f32 %v567, %v446
        %v576 = vmul.f32 %v568, %v446
        %v577 = vmul.f32 %v569, %v446
        %v578 = vmul.f32 %v570, %v446
        %v579 = vmul.f32 %v571, %v446
        %v580 = vsel %vm456, %v572, 0.0
        %581 = vadd.xlane.f32.xlu0 %v580
        %v582 = vpop.xlane.xlu0 %581
        %v583 = vsel %vm456, %v573, 0.0
        %584 = vadd.xlane.f32.xlu0 %v583
        %v585 = vpop.xlane.xlu0 %584
        %v586 = vsel %vm456, %v574, 0.0
        %587 = vadd.xlane.f32.xlu0 %v586
        %v588 = vpop.xlane.xlu0 %587
        %v589 = vsel %vm456, %v575, 0.0
        %590 = vadd.xlane.f32.xlu0 %v589
        %v591 = vpop.xlane.xlu0 %590
        %v592 = vsel %vm456, %v576, 0.0
        %593 = vadd.xlane.f32.xlu0 %v592
        %v594 = vpop.xlane.xlu0 %593
        %v595 = vsel %vm456, %v577, 0.0
        %596 = vadd.xlane.f32.xlu0 %v595
        %v597 = vpop.xlane.xlu0 %596
        %v598 = vsel %vm456, %v578, 0.0
        %599 = vadd.xlane.f32.xlu0 %v598
        %v600 = vpop.xlane.xlu0 %599
        %v601 = vsel %vm456, %v579, 0.0
        %602 = vadd.xlane.f32.xlu0 %v601
        %v603 = vpop.xlane.xlu0 %602
        %s604 = scalar_lea.vmem %s407, 256 [#allocation2]
        %v605 = vld [vmem:[%s604] sm:$0xff]
        %v606 = vld [vmem:[%s604 + $0x8] sm:$0xff]
        %v607 = vld [vmem:[%s604 + $0x10] sm:$0xff]
        %v608 = vld [vmem:[%s604 + $0x18] sm:$0xff]
        %v609 = vld [vmem:[%s604 + $0x20] sm:$0xff]
        %v610 = vld [vmem:[%s604 + $0x28] sm:$0xff]
        %v611 = vld [vmem:[%s604 + $0x30] sm:$0xff]
        %v612 = vld [vmem:[%s604 + $0x38] sm:$0xff]
        %v613 = vmul.f32 %v605, %v446
        %v614 = vmul.f32 %v606, %v446
        %v615 = vmul.f32 %v607, %v446
        %v616 = vmul.f32 %v608, %v446
        %v617 = vmul.f32 %v609, %v446
        %v618 = vmul.f32 %v610, %v446
        %v619 = vmul.f32 %v611, %v446
        %v620 = vmul.f32 %v612, %v446
        %v621 = vsel %vm456, %v613, 0.0
        %622 = vadd.xlane.f32.xlu0 %v621
        %v623 = vpop.xlane.xlu0 %622
        %v624 = vsel %vm456, %v614, 0.0
        %625 = vadd.xlane.f32.xlu0 %v624
        %v626 = vpop.xlane.xlu0 %625
        %v627 = vsel %vm456, %v615, 0.0
        %628 = vadd.xlane.f32.xlu0 %v627
        %v629 = vpop.xlane.xlu0 %628
        %v630 = vsel %vm456, %v616, 0.0
        %631 = vadd.xlane.f32.xlu0 %v630
        %v632 = vpop.xlane.xlu0 %631
        %v633 = vsel %vm456, %v617, 0.0
        %634 = vadd.xlane.f32.xlu0 %v633
        %v635 = vpop.xlane.xlu0 %634
        %v636 = vsel %vm456, %v618, 0.0
        %637 = vadd.xlane.f32.xlu0 %v636
        %v638 = vpop.xlane.xlu0 %637
        %v639 = vsel %vm456, %v619, 0.0
        %640 = vadd.xlane.f32.xlu0 %v639
        %v641 = vpop.xlane.xlu0 %640
        %v642 = vsel %vm456, %v620, 0.0
        %643 = vadd.xlane.f32.xlu0 %v642
        %v644 = vpop.xlane.xlu0 %643
        %s645 = scalar_lea.vmem %s407, 320 [#allocation2]
        %v646 = vld [vmem:[%s645] sm:$0xff]
        %v647 = vld [vmem:[%s645 + $0x8] sm:$0xff]
        %v648 = vld [vmem:[%s645 + $0x10] sm:$0xff]
        %v649 = vld [vmem:[%s645 + $0x18] sm:$0xff]
        %v650 = vld [vmem:[%s645 + $0x20] sm:$0xff]
        %v651 = vld [vmem:[%s645 + $0x28] sm:$0xff]
        %v652 = vld [vmem:[%s645 + $0x30] sm:$0xff]
        %v653 = vld [vmem:[%s645 + $0x38] sm:$0xff]
        %v654 = vmul.f32 %v646, %v446
        %v655 = vmul.f32 %v647, %v446
        %v656 = vmul.f32 %v648, %v446
        %v657 = vmul.f32 %v649, %v446
        %v658 = vmul.f32 %v650, %v446
        %v659 = vmul.f32 %v651, %v446
        %v660 = vmul.f32 %v652, %v446
        %v661 = vmul.f32 %v653, %v446
        %v662 = vsel %vm456, %v654, 0.0
        %663 = vadd.xlane.f32.xlu0 %v662
        %v664 = vpop.xlane.xlu0 %663
        %v665 = vsel %vm456, %v655, 0.0
        %666 = vadd.xlane.f32.xlu0 %v665
        %v667 = vpop.xlane.xlu0 %666
        %v668 = vsel %vm456, %v656, 0.0
        %669 = vadd.xlane.f32.xlu0 %v668
        %v670 = vpop.xlane.xlu0 %669
        %v671 = vsel %vm456, %v657, 0.0
        %672 = vadd.xlane.f32.xlu0 %v671
        %v673 = vpop.xlane.xlu0 %672
        %v674 = vsel %vm456, %v658, 0.0
        %675 = vadd.xlane.f32.xlu0 %v674
        %v676 = vpop.xlane.xlu0 %675
        %v677 = vsel %vm456, %v659, 0.0
        %678 = vadd.xlane.f32.xlu0 %v677
        %v679 = vpop.xlane.xlu0 %678
        %v680 = vsel %vm456, %v660, 0.0
        %681 = vadd.xlane.f32.xlu0 %v680
        %v682 = vpop.xlane.xlu0 %681
        %v683 = vsel %vm456, %v661, 0.0
        %684 = vadd.xlane.f32.xlu0 %v683
        %v685 = vpop.xlane.xlu0 %684
        %s686 = scalar_lea.vmem %s407, 384 [#allocation2]
        %v687 = vld [vmem:[%s686] sm:$0xff]
        %v688 = vld [vmem:[%s686 + $0x8] sm:$0xff]
        %v689 = vld [vmem:[%s686 + $0x10] sm:$0xff]
        %v690 = vld [vmem:[%s686 + $0x18] sm:$0xff]
        %v691 = vld [vmem:[%s686 + $0x20] sm:$0xff]
        %v692 = vld [vmem:[%s686 + $0x28] sm:$0xff]
        %v693 = vld [vmem:[%s686 + $0x30] sm:$0xff]
        %v694 = vld [vmem:[%s686 + $0x38] sm:$0xff]
        %v695 = vmul.f32 %v687, %v446
        %v696 = vmul.f32 %v688, %v446
        %v697 = vmul.f32 %v689, %v446
        %v698 = vmul.f32 %v690, %v446
        %v699 = vmul.f32 %v691, %v446
        %v700 = vmul.f32 %v692, %v446
        %v701 = vmul.f32 %v693, %v446
        %v702 = vmul.f32 %v694, %v446
        %v703 = vsel %vm456, %v695, 0.0
        %704 = vadd.xlane.f32.xlu0 %v703
        %v705 = vpop.xlane.xlu0 %704
        %v706 = vsel %vm456, %v696, 0.0
        %707 = vadd.xlane.f32.xlu0 %v706
        %v708 = vpop.xlane.xlu0 %707
        %v709 = vsel %vm456, %v697, 0.0
        %710 = vadd.xlane.f32.xlu0 %v709
        %v711 = vpop.xlane.xlu0 %710
        %v712 = vsel %vm456, %v698, 0.0
        %713 = vadd.xlane.f32.xlu0 %v712
        %v714 = vpop.xlane.xlu0 %713
        %v715 = vsel %vm456, %v699, 0.0
        %716 = vadd.xlane.f32.xlu0 %v715
        %v717 = vpop.xlane.xlu0 %716
        %v718 = vsel %vm456, %v700, 0.0
        %719 = vadd.xlane.f32.xlu0 %v718
        %v720 = vpop.xlane.xlu0 %719
        %v721 = vsel %vm456, %v701, 0.0
        %722 = vadd.xlane.f32.xlu0 %v721
        %v723 = vpop.xlane.xlu0 %722
        %v724 = vsel %vm456, %v702, 0.0
        %725 = vadd.xlane.f32.xlu0 %v724
        %v726 = vpop.xlane.xlu0 %725
        %s727 = scalar_lea.vmem %s407, 448 [#allocation2]
        %v728 = vld [vmem:[%s727] sm:$0xff]
        %v729 = vld [vmem:[%s727 + $0x8] sm:$0xff]
        %v730 = vld [vmem:[%s727 + $0x10] sm:$0xff]
        %v731 = vld [vmem:[%s727 + $0x18] sm:$0xff]
        %v732 = vld [vmem:[%s727 + $0x20] sm:$0xff]
        %v733 = vld [vmem:[%s727 + $0x28] sm:$0xff]
        %v734 = vld [vmem:[%s727 + $0x30] sm:$0xff]
        %v735 = vld [vmem:[%s727 + $0x38] sm:$0xff]
        %v736 = vmul.f32 %v728, %v446
        %v737 = vmul.f32 %v729, %v446
        %v738 = vmul.f32 %v730, %v446
        %v739 = vmul.f32 %v731, %v446
        %v740 = vmul.f32 %v732, %v446
        %v741 = vmul.f32 %v733, %v446
        %v742 = vmul.f32 %v734, %v446
        %v743 = vmul.f32 %v735, %v446
        %v744 = vsel %vm456, %v736, 0.0
        %745 = vadd.xlane.f32.xlu0 %v744
        %v746 = vpop.xlane.xlu0 %745
        %v747 = vsel %vm456, %v737, 0.0
        %748 = vadd.xlane.f32.xlu0 %v747
        %v749 = vpop.xlane.xlu0 %748
        %v750 = vsel %vm456, %v738, 0.0
        %751 = vadd.xlane.f32.xlu0 %v750
        %v752 = vpop.xlane.xlu0 %751
        %v753 = vsel %vm456, %v739, 0.0
        %754 = vadd.xlane.f32.xlu0 %v753
        %v755 = vpop.xlane.xlu0 %754
        %v756 = vsel %vm456, %v740, 0.0
        %757 = vadd.xlane.f32.xlu0 %v756
        %v758 = vpop.xlane.xlu0 %757
        %v759 = vsel %vm456, %v741, 0.0
        %760 = vadd.xlane.f32.xlu0 %v759
        %v761 = vpop.xlane.xlu0 %760
        %v762 = vsel %vm456, %v742, 0.0
        %763 = vadd.xlane.f32.xlu0 %v762
        %v764 = vpop.xlane.xlu0 %763
        %v765 = vsel %vm456, %v743, 0.0
        %766 = vadd.xlane.f32.xlu0 %v765
        %v767 = vpop.xlane.xlu0 %766
        %v768 = vmax.f32 %v459, %v500
        %v769 = vmax.f32 %v462, %v503
        %v770 = vmax.f32 %v465, %v506
        %v771 = vmax.f32 %v468, %v509
        %v772 = vmax.f32 %v471, %v512
        %v773 = vmax.f32 %v474, %v515
        %v774 = vmax.f32 %v477, %v518
        %v775 = vmax.f32 %v480, %v521
        %v776 = vmax.f32 %v768, %v541
        %v777 = vmax.f32 %v769, %v544
        %v778 = vmax.f32 %v770, %v547
        %v779 = vmax.f32 %v771, %v550
        %v780 = vmax.f32 %v772, %v553
        %v781 = vmax.f32 %v773, %v556
        %v782 = vmax.f32 %v774, %v559
        %v783 = vmax.f32 %v775, %v562
        %v784 = vmax.f32 %v776, %v582
        %v785 = vmax.f32 %v777, %v585
        %v786 = vmax.f32 %v778, %v588
        %v787 = vmax.f32 %v779, %v591
        %v788 = vmax.f32 %v780, %v594
        %v789 = vmax.f32 %v781, %v597
        %v790 = vmax.f32 %v782, %v600
        %v791 = vmax.f32 %v783, %v603
        %v792 = vmax.f32 %v784, %v623
        %v793 = vmax.f32 %v785, %v626
        %v794 = vmax.f32 %v786, %v629
        %v795 = vmax.f32 %v787, %v632
        %v796 = vmax.f32 %v788, %v635
        %v797 = vmax.f32 %v789, %v638
        %v798 = vmax.f32 %v790, %v641
        %v799 = vmax.f32 %v791, %v644
        %v800 = vmax.f32 %v792, %v664
        %v801 = vmax.f32 %v793, %v667
        %v802 = vmax.f32 %v794, %v670
        %v803 = vmax.f32 %v795, %v673
        %v804 = vmax.f32 %v796, %v676
        %v805 = vmax.f32 %v797, %v679
        %v806 = vmax.f32 %v798, %v682
        %v807 = vmax.f32 %v799, %v685
        %v808 = vmax.f32 %v800, %v705
        %v809 = vmax.f32 %v801, %v708
        %v810 = vmax.f32 %v802, %v711
        %v811 = vmax.f32 %v803, %v714
        %v812 = vmax.f32 %v804, %v717
        %v813 = vmax.f32 %v805, %v720
        %v814 = vmax.f32 %v806, %v723
        %v815 = vmax.f32 %v807, %v726
        %v816 = vmax.f32 %v808, %v746
        %v817 = vmax.f32 %v809, %v749
        %v818 = vmax.f32 %v810, %v752
        %v819 = vmax.f32 %v811, %v755
        %v820 = vmax.f32 %v812, %v758
        %v821 = vmax.f32 %v813, %v761
        %v822 = vmax.f32 %v814, %v764
        %v823 = vmax.f32 %v815, %v767
        %v824 = vsub.f32 %v459, %v816
        %v825 = vsub.f32 %v462, %v817
        %v826 = vsub.f32 %v465, %v818
        %v827 = vsub.f32 %v468, %v819
        %v828 = vsub.f32 %v471, %v820
        %v829 = vsub.f32 %v474, %v821
        %v830 = vsub.f32 %v477, %v822
        %v831 = vsub.f32 %v480, %v823
        %v832 = vmul.f32 %v824, 1.442695
        %v833 = vpow.pop %v832
        %v834 = vmul.f32 %v825, 1.442695
        %v835 = vpow.pop %v834
        %v836 = vmul.f32 %v826, 1.442695
        %v837 = vpow.pop %v836
        %v838 = vmul.f32 %v827, 1.442695
        %v839 = vpow.pop %v838
        %v840 = vmul.f32 %v828, 1.442695
        %v841 = vpow.pop %v840
        %v842 = vmul.f32 %v829, 1.442695
        %v843 = vpow.pop %v842
        %v844 = vmul.f32 %v830, 1.442695
        %v845 = vpow.pop %v844
        %v846 = vmul.f32 %v831, 1.442695
        %v847 = vpow.pop %v846
        %v848 = vsub.f32 %v500, %v816
        %v849 = vsub.f32 %v503, %v817
        %v850 = vsub.f32 %v506, %v818
        %v851 = vsub.f32 %v509, %v819
        %v852 = vsub.f32 %v512, %v820
        %v853 = vsub.f32 %v515, %v821
        %v854 = vsub.f32 %v518, %v822
        %v855 = vsub.f32 %v521, %v823
        %v856 = vmul.f32 %v848, 1.442695
        %v857 = vpow.pop %v856
        %v858 = vmul.f32 %v849, 1.442695
        %v859 = vpow.pop %v858
        %v860 = vmul.f32 %v850, 1.442695
        %v861 = vpow.pop %v860
        %v862 = vmul.f32 %v851, 1.442695
        %v863 = vpow.pop %v862
        %v864 = vmul.f32 %v852, 1.442695
        %v865 = vpow.pop %v864
        %v866 = vmul.f32 %v853, 1.442695
        %v867 = vpow.pop %v866
        %v868 = vmul.f32 %v854, 1.442695
        %v869 = vpow.pop %v868
        %v870 = vmul.f32 %v855, 1.442695
        %v871 = vpow.pop %v870
        %v872 = vsub.f32 %v541, %v816
        %v873 = vsub.f32 %v544, %v817
        %v874 = vsub.f32 %v547, %v818
        %v875 = vsub.f32 %v550, %v819
        %v876 = vsub.f32 %v553, %v820
        %v877 = vsub.f32 %v556, %v821
        %v878 = vsub.f32 %v559, %v822
        %v879 = vsub.f32 %v562, %v823
        %v880 = vmul.f32 %v872, 1.442695
        %v881 = vpow.pop %v880
        %v882 = vmul.f32 %v873, 1.442695
        %v883 = vpow.pop %v882
        %v884 = vmul.f32 %v874, 1.442695
        %v885 = vpow.pop %v884
        %v886 = vmul.f32 %v875, 1.442695
        %v887 = vpow.pop %v886
        %v888 = vmul.f32 %v876, 1.442695
        %v889 = vpow.pop %v888
        %v890 = vmul.f32 %v877, 1.442695
        %v891 = vpow.pop %v890
        %v892 = vmul.f32 %v878, 1.442695
        %v893 = vpow.pop %v892
        %v894 = vmul.f32 %v879, 1.442695
        %v895 = vpow.pop %v894
        %v896 = vsub.f32 %v582, %v816
        %v897 = vsub.f32 %v585, %v817
        %v898 = vsub.f32 %v588, %v818
        %v899 = vsub.f32 %v591, %v819
        %v900 = vsub.f32 %v594, %v820
        %v901 = vsub.f32 %v597, %v821
        %v902 = vsub.f32 %v600, %v822
        %v903 = vsub.f32 %v603, %v823
        %v904 = vmul.f32 %v896, 1.442695
        %v905 = vpow.pop %v904
        %v906 = vmul.f32 %v897, 1.442695
        %v907 = vpow.pop %v906
        %v908 = vmul.f32 %v898, 1.442695
        %v909 = vpow.pop %v908
        %v910 = vmul.f32 %v899, 1.442695
        %v911 = vpow.pop %v910
        %v912 = vmul.f32 %v900, 1.442695
        %v913 = vpow.pop %v912
        %v914 = vmul.f32 %v901, 1.442695
        %v915 = vpow.pop %v914
        %v916 = vmul.f32 %v902, 1.442695
        %v917 = vpow.pop %v916
        %v918 = vmul.f32 %v903, 1.442695
        %v919 = vpow.pop %v918
        %v920 = vsub.f32 %v623, %v816
        %v921 = vsub.f32 %v626, %v817
        %v922 = vsub.f32 %v629, %v818
        %v923 = vsub.f32 %v632, %v819
        %v924 = vsub.f32 %v635, %v820
        %v925 = vsub.f32 %v638, %v821
        %v926 = vsub.f32 %v641, %v822
        %v927 = vsub.f32 %v644, %v823
        %v928 = vmul.f32 %v920, 1.442695
        %v929 = vpow.pop %v928
        %v930 = vmul.f32 %v921, 1.442695
        %v931 = vpow.pop %v930
        %v932 = vmul.f32 %v922, 1.442695
        %v933 = vpow.pop %v932
        %v934 = vmul.f32 %v923, 1.442695
        %v935 = vpow.pop %v934
        %v936 = vmul.f32 %v924, 1.442695
        %v937 = vpow.pop %v936
        %v938 = vmul.f32 %v925, 1.442695
        %v939 = vpow.pop %v938
        %v940 = vmul.f32 %v926, 1.442695
        %v941 = vpow.pop %v940
        %v942 = vmul.f32 %v927, 1.442695
        %v943 = vpow.pop %v942
        %v944 = vsub.f32 %v664, %v816
        %v945 = vsub.f32 %v667, %v817
        %v946 = vsub.f32 %v670, %v818
        %v947 = vsub.f32 %v673, %v819
        %v948 = vsub.f32 %v676, %v820
        %v949 = vsub.f32 %v679, %v821
        %v950 = vsub.f32 %v682, %v822
        %v951 = vsub.f32 %v685, %v823
        %v952 = vmul.f32 %v944, 1.442695
        %v953 = vpow.pop %v952
        %v954 = vmul.f32 %v945, 1.442695
        %v955 = vpow.pop %v954
        %v956 = vmul.f32 %v946, 1.442695
        %v957 = vpow.pop %v956
        %v958 = vmul.f32 %v947, 1.442695
        %v959 = vpow.pop %v958
        %v960 = vmul.f32 %v948, 1.442695
        %v961 = vpow.pop %v960
        %v962 = vmul.f32 %v949, 1.442695
        %v963 = vpow.pop %v962
        %v964 = vmul.f32 %v950, 1.442695
        %v965 = vpow.pop %v964
        %v966 = vmul.f32 %v951, 1.442695
        %v967 = vpow.pop %v966
        %v968 = vsub.f32 %v705, %v816
        %v969 = vsub.f32 %v708, %v817
        %v970 = vsub.f32 %v711, %v818
        %v971 = vsub.f32 %v714, %v819
        %v972 = vsub.f32 %v717, %v820
        %v973 = vsub.f32 %v720, %v821
        %v974 = vsub.f32 %v723, %v822
        %v975 = vsub.f32 %v726, %v823
        %v976 = vmul.f32 %v968, 1.442695
        %v977 = vpow.pop %v976
        %v978 = vmul.f32 %v969, 1.442695
        %v979 = vpow.pop %v978
        %v980 = vmul.f32 %v970, 1.442695
        %v981 = vpow.pop %v980
        %v982 = vmul.f32 %v971, 1.442695
        %v983 = vpow.pop %v982
        %v984 = vmul.f32 %v972, 1.442695
        %v985 = vpow.pop %v984
        %v986 = vmul.f32 %v973, 1.442695
        %v987 = vpow.pop %v986
        %v988 = vmul.f32 %v974, 1.442695
        %v989 = vpow.pop %v988
        %v990 = vmul.f32 %v975, 1.442695
        %v991 = vpow.pop %v990
        %v992 = vsub.f32 %v746, %v816
        %v993 = vsub.f32 %v749, %v817
        %v994 = vsub.f32 %v752, %v818
        %v995 = vsub.f32 %v755, %v819
        %v996 = vsub.f32 %v758, %v820
        %v997 = vsub.f32 %v761, %v821
        %v998 = vsub.f32 %v764, %v822
        %v999 = vsub.f32 %v767, %v823
        %v1000 = vmul.f32 %v992, 1.442695
        %v1001 = vpow.pop %v1000
        %v1002 = vmul.f32 %v993, 1.442695
        %v1003 = vpow.pop %v1002
        %v1004 = vmul.f32 %v994, 1.442695
        %v1005 = vpow.pop %v1004
        %v1006 = vmul.f32 %v995, 1.442695
        %v1007 = vpow.pop %v1006
        %v1008 = vmul.f32 %v996, 1.442695
        %v1009 = vpow.pop %v1008
        %v1010 = vmul.f32 %v997, 1.442695
        %v1011 = vpow.pop %v1010
        %v1012 = vmul.f32 %v998, 1.442695
        %v1013 = vpow.pop %v1012
        %v1014 = vmul.f32 %v999, 1.442695
        %v1015 = vpow.pop %v1014
        %v1016 = vadd.f32 %v833, %v857
        %v1017 = vadd.f32 %v835, %v859
        %v1018 = vadd.f32 %v837, %v861
        %v1019 = vadd.f32 %v839, %v863
        %v1020 = vadd.f32 %v841, %v865
        %v1021 = vadd.f32 %v843, %v867
        %v1022 = vadd.f32 %v845, %v869
        %v1023 = vadd.f32 %v847, %v871
        %v1024 = vadd.f32 %v1016, %v881
        %v1025 = vadd.f32 %v1017, %v883
        %v1026 = vadd.f32 %v1018, %v885
        %v1027 = vadd.f32 %v1019, %v887
        %v1028 = vadd.f32 %v1020, %v889
        %v1029 = vadd.f32 %v1021, %v891
        %v1030 = vadd.f32 %v1022, %v893
        %v1031 = vadd.f32 %v1023, %v895
        %v1032 = vadd.f32 %v1024, %v905
        %v1033 = vadd.f32 %v1025, %v907
        %v1034 = vadd.f32 %v1026, %v909
        %v1035 = vadd.f32 %v1027, %v911
        %v1036 = vadd.f32 %v1028, %v913
        %v1037 = vadd.f32 %v1029, %v915
        %v1038 = vadd.f32 %v1030, %v917
        %v1039 = vadd.f32 %v1031, %v919
        %v1040 = vadd.f32 %v1032, %v929
        %v1041 = vadd.f32 %v1033, %v931
        %v1042 = vadd.f32 %v1034, %v933
        %v1043 = vadd.f32 %v1035, %v935
        %v1044 = vadd.f32 %v1036, %v937
        %v1045 = vadd.f32 %v1037, %v939
        %v1046 = vadd.f32 %v1038, %v941
        %v1047 = vadd.f32 %v1039, %v943
        %v1048 = vadd.f32 %v1040, %v953
        %v1049 = vadd.f32 %v1041, %v955
        %v1050 = vadd.f32 %v1042, %v957
        %v1051 = vadd.f32 %v1043, %v959
        %v1052 = vadd.f32 %v1044, %v961
        %v1053 = vadd.f32 %v1045, %v963
        %v1054 = vadd.f32 %v1046, %v965
        %v1055 = vadd.f32 %v1047, %v967
        %v1056 = vadd.f32 %v1048, %v977
        %v1057 = vadd.f32 %v1049, %v979
        %v1058 = vadd.f32 %v1050, %v981
        %v1059 = vadd.f32 %v1051, %v983
        %v1060 = vadd.f32 %v1052, %v985
        %v1061 = vadd.f32 %v1053, %v987
        %v1062 = vadd.f32 %v1054, %v989
        %v1063 = vadd.f32 %v1055, %v991
        %v1064 = vadd.f32 %v1056, %v1001
        %v1065 = vadd.f32 %v1057, %v1003
        %v1066 = vadd.f32 %v1058, %v1005
        %v1067 = vadd.f32 %v1059, %v1007
        %v1068 = vadd.f32 %v1060, %v1009
        %v1069 = vadd.f32 %v1061, %v1011
        %v1070 = vadd.f32 %v1062, %v1013
        %v1071 = vadd.f32 %v1063, %v1015
        %v1072 = vrcp.pop %v1064
        %v1073 = vmul.f32 1.0, %v1072
        %v1074 = vrcp.pop %v1065
        %v1075 = vmul.f32 1.0, %v1074
        %v1076 = vrcp.pop %v1066
        %v1077 = vmul.f32 1.0, %v1076
        %v1078 = vrcp.pop %v1067
        %v1079 = vmul.f32 1.0, %v1078
        %v1080 = vrcp.pop %v1068
        %v1081 = vmul.f32 1.0, %v1080
        %v1082 = vrcp.pop %v1069
        %v1083 = vmul.f32 1.0, %v1082
        %v1084 = vrcp.pop %v1070
        %v1085 = vmul.f32 1.0, %v1084
        %v1086 = vrcp.pop %v1071
        %v1087 = vmul.f32 1.0, %v1086
        %v1088 = vmul.f32 %v833, %v434
        %v1089 = vmul.f32 %v835, %v435
        %v1090 = vmul.f32 %v837, %v436
        %v1091 = vmul.f32 %v839, %v437
        %v1092 = vmul.f32 %v841, %v438
        %v1093 = vmul.f32 %v843, %v439
        %v1094 = vmul.f32 %v845, %v440
        %v1095 = vmul.f32 %v847, %v441
        %v1096 = vmul.f32 %v857, %v482
        %v1097 = vmul.f32 %v859, %v483
        %v1098 = vmul.f32 %v861, %v484
        %v1099 = vmul.f32 %v863, %v485
        %v1100 = vmul.f32 %v865, %v486
        %v1101 = vmul.f32 %v867, %v487
        %v1102 = vmul.f32 %v869, %v488
        %v1103 = vmul.f32 %v871, %v489
        %v1104 = vadd.f32 %v1088, %v1096
        %v1105 = vadd.f32 %v1089, %v1097
        %v1106 = vadd.f32 %v1090, %v1098
        %v1107 = vadd.f32 %v1091, %v1099
        %v1108 = vadd.f32 %v1092, %v1100
        %v1109 = vadd.f32 %v1093, %v1101
        %v1110 = vadd.f32 %v1094, %v1102
        %v1111 = vadd.f32 %v1095, %v1103
        %v1112 = vmul.f32 %v881, %v523
        %v1113 = vmul.f32 %v883, %v524
        %v1114 = vmul.f32 %v885, %v525
        %v1115 = vmul.f32 %v887, %v526
        %v1116 = vmul.f32 %v889, %v527
        %v1117 = vmul.f32 %v891, %v528
        %v1118 = vmul.f32 %v893, %v529
        %v1119 = vmul.f32 %v895, %v530
        %v1120 = vadd.f32 %v1104, %v1112
        %v1121 = vadd.f32 %v1105, %v1113
        %v1122 = vadd.f32 %v1106, %v1114
        %v1123 = vadd.f32 %v1107, %v1115
        %v1124 = vadd.f32 %v1108, %v1116
        %v1125 = vadd.f32 %v1109, %v1117
        %v1126 = vadd.f32 %v1110, %v1118
        %v1127 = vadd.f32 %v1111, %v1119
        %v1128 = vmul.f32 %v905, %v564
        %v1129 = vmul.f32 %v907, %v565
        %v1130 = vmul.f32 %v909, %v566
        %v1131 = vmul.f32 %v911, %v567
        %v1132 = vmul.f32 %v913, %v568
        %v1133 = vmul.f32 %v915, %v569
        %v1134 = vmul.f32 %v917, %v570
        %v1135 = vmul.f32 %v919, %v571
        %v1136 = vadd.f32 %v1120, %v1128
        %v1137 = vadd.f32 %v1121, %v1129
        %v1138 = vadd.f32 %v1122, %v1130
        %v1139 = vadd.f32 %v1123, %v1131
        %v1140 = vadd.f32 %v1124, %v1132
        %v1141 = vadd.f32 %v1125, %v1133
        %v1142 = vadd.f32 %v1126, %v1134
        %v1143 = vadd.f32 %v1127, %v1135
        %v1144 = vmul.f32 %v929, %v605
        %v1145 = vmul.f32 %v931, %v606
        %v1146 = vmul.f32 %v933, %v607
        %v1147 = vmul.f32 %v935, %v608
        %v1148 = vmul.f32 %v937, %v609
        %v1149 = vmul.f32 %v939, %v610
        %v1150 = vmul.f32 %v941, %v611
        %v1151 = vmul.f32 %v943, %v612
        %v1152 = vadd.f32 %v1136, %v1144
        %v1153 = vadd.f32 %v1137, %v1145
        %v1154 = vadd.f32 %v1138, %v1146
        %v1155 = vadd.f32 %v1139, %v1147
        %v1156 = vadd.f32 %v1140, %v1148
        %v1157 = vadd.f32 %v1141, %v1149
        %v1158 = vadd.f32 %v1142, %v1150
        %v1159 = vadd.f32 %v1143, %v1151
        %v1160 = vmul.f32 %v953, %v646
        %v1161 = vmul.f32 %v955, %v647
        %v1162 = vmul.f32 %v957, %v648
        %v1163 = vmul.f32 %v959, %v649
        %v1164 = vmul.f32 %v961, %v650
        %v1165 = vmul.f32 %v963, %v651
        %v1166 = vmul.f32 %v965, %v652
        %v1167 = vmul.f32 %v967, %v653
        %v1168 = vadd.f32 %v1152, %v1160
        %v1169 = vadd.f32 %v1153, %v1161
        %v1170 = vadd.f32 %v1154, %v1162
        %v1171 = vadd.f32 %v1155, %v1163
        %v1172 = vadd.f32 %v1156, %v1164
        %v1173 = vadd.f32 %v1157, %v1165
        %v1174 = vadd.f32 %v1158, %v1166
        %v1175 = vadd.f32 %v1159, %v1167
        %v1176 = vmul.f32 %v977, %v687
        %v1177 = vmul.f32 %v979, %v688
        %v1178 = vmul.f32 %v981, %v689
        %v1179 = vmul.f32 %v983, %v690
        %v1180 = vmul.f32 %v985, %v691
        %v1181 = vmul.f32 %v987, %v692
        %v1182 = vmul.f32 %v989, %v693
        %v1183 = vmul.f32 %v991, %v694
        %v1184 = vadd.f32 %v1168, %v1176
        %v1185 = vadd.f32 %v1169, %v1177
        %v1186 = vadd.f32 %v1170, %v1178
        %v1187 = vadd.f32 %v1171, %v1179
        %v1188 = vadd.f32 %v1172, %v1180
        %v1189 = vadd.f32 %v1173, %v1181
        %v1190 = vadd.f32 %v1174, %v1182
        %v1191 = vadd.f32 %v1175, %v1183
        %v1192 = vmul.f32 %v1001, %v728
        %v1193 = vmul.f32 %v1003, %v729
        %v1194 = vmul.f32 %v1005, %v730
        %v1195 = vmul.f32 %v1007, %v731
        %v1196 = vmul.f32 %v1009, %v732
        %v1197 = vmul.f32 %v1011, %v733
        %v1198 = vmul.f32 %v1013, %v734
        %v1199 = vmul.f32 %v1015, %v735
        %v1200 = vadd.f32 %v1184, %v1192
        %v1201 = vadd.f32 %v1185, %v1193
        %v1202 = vadd.f32 %v1186, %v1194
        %v1203 = vadd.f32 %v1187, %v1195
        %v1204 = vadd.f32 %v1188, %v1196
        %v1205 = vadd.f32 %v1189, %v1197
        %v1206 = vadd.f32 %v1190, %v1198
        %v1207 = vadd.f32 %v1191, %v1199
        %v1208 = vmul.f32 %v1200, %v1073
        %v1209 = vmul.f32 %v1201, %v1075
        %v1210 = vmul.f32 %v1202, %v1077
        %v1211 = vmul.f32 %v1203, %v1079
        %v1212 = vmul.f32 %v1204, %v1081
        %v1213 = vmul.f32 %v1205, %v1083
        %v1214 = vmul.f32 %v1206, %v1085
        %v1215 = vmul.f32 %v1207, %v1087
        %1216 = vst.msk [vmem:[%s431] sm:$0xff] %vm456, %v1208
        %1217 = vst.msk [vmem:[%s431 + $0x8] sm:$0xff] %vm456, %v1209
        %1218 = vst.msk [vmem:[%s431 + $0x10] sm:$0xff] %vm456, %v1210
        %1219 = vst.msk [vmem:[%s431 + $0x18] sm:$0xff] %vm456, %v1211
        %1220 = vst.msk [vmem:[%s431 + $0x20] sm:$0xff] %vm456, %v1212
        %1221 = vst.msk [vmem:[%s431 + $0x28] sm:$0xff] %vm456, %v1213
        %1222 = vst.msk [vmem:[%s431 + $0x30] sm:$0xff] %vm456, %v1214
        %1223 = vst.msk [vmem:[%s431 + $0x38] sm:$0xff] %vm456, %v1215
        %s1224 = smul.u32 8, %s13
        %p1225 = scmp.lt.s32.totalorder %s1224, 31
        %s1226 = scalar_select %p1225, %s1224, 31
        %s1227 = smul.addr %s1226, 8
        %s1228 = scalar_lea.vmem %s2, %s1227
        // Predicated region
        $region67: #{tpu_custom_call.1} parent=61 // pred_check
          %p1229 = pneg %p78
        $region68: #{tpu_custom_call.1} parent=61 // pred_check_branch
          %1231 = sbr.rel (%p1229) target = $region70
        $region69: #{tpu_custom_call.1} parent=61 // pred_region
          %s1232 = smul.u32 8, %s13
        $region70: #{tpu_custom_call.1} parent=61 // pred_fallthru
          _
      $region62: #{tpu_custom_call.1} parent=5 // pred_fallthru
        _
      %p1233 = scmp.le.s32.totalorder 2, %s8
      // Predicated region
      $region71: #{tpu_custom_call.1} parent=5 // pred_check
        %p1234 = pneg %p1233
      $region72: #{tpu_custom_call.1} parent=5 // pred_check_branch
        %1236 = sbr.rel (%p1234) target = $region74
      $region73: #{tpu_custom_call.1} parent=5 // pred_region
        %s1237 = ssub.s32 %s8, 2
        // Predicated region
        $region75: #{tpu_custom_call.1} parent=73 // pred_check
          %p1238 = pneg %p84
        $region76: #{tpu_custom_call.1} parent=73 // pred_check_branch
          %1240 = sbr.rel (%p1238) target = $region78
        $region77: #{tpu_custom_call.1} parent=73 // pred_region
          %s1241 = smul.u32 8, %s14
          %p1242 = scmp.lt.s32.totalorder %s1241, 31
          %s1243 = scalar_select %p1242, %s1241, 31
          %s1244 = smul.addr %s1243, 8
          %s1245 = scalar_lea.vmem %s2, %s1244
        $region78: #{tpu_custom_call.1} parent=73 // pred_fallthru
          _
      $region74: #{tpu_custom_call.1} parent=5 // pred_fallthru
        _
    $region6: #{tpu_custom_call.1} parent=1 // loop_footer
      %s12 = sadd.s32 1, %s8
    $region7: #{tpu_custom_call.1} parent=1 // loop_footer_branch
      %7 = sbr.rel target = $region3
    $region8: #{tpu_custom_call.1} parent=1 // loop_exit
      _

</llo_original>
